<compile_context>
chip_gen: v7x
topology: tpu7x:2x2x1
jax: 0.10.0
libtpu: 0.0.40
codegen_flags: <defaults>
</compile_context>

<pallas_src>
import jax
import jax.numpy as jnp
from jax.experimental import pallas as pl
from jax.experimental.pallas import tpu as pltpu

EPS = 1e-5  # nn.InstanceNorm2d default eps


def double_conv_kernel(x_ref, w1_ref, w2_ref, ws_ref, b_ref,
                       r1_ref, r1t_ref, r2_ref, r2t_ref, out_ref):
    # x_ref   : (1, H, W*Cin)        lane-dense folded input (one sample)
    # w1_ref  : (3, W*Cin,  W*Cmid)  banded block-Toeplitz weights, row kh
    # w2_ref  : (3, W*Cmid, W*Cout)
    # ws_ref  : (W*Cin, W*Cout)      block-diagonal 1x1 skip weight
    # b_ref   : (1, W*Cout)          lane-tiled skip bias (f32)
    # r1_ref  : (W*Cmid, Cmid)       per-channel reduce matrix, r1t = r1.T
    # r2_ref  : (W*Cout, Cout)
    # out_ref : (1, H, W*Cout)
    H = x_ref.shape[1]
    cdt = w1_ref.dtype                      # matmul operand dtype
    xf = x_ref[0]                           # (H, W*Cin)

    # (H, H) row-shift matrices: sd @ a -> a[h-1] (row 0 = 0), su @ a -> a[h+1]
    row = jax.lax.broadcasted_iota(jnp.int32, (H, H), 0)
    col = jax.lax.broadcasted_iota(jnp.int32, (H, H), 1)
    sd = (col == row - 1).astype(cdt)
    su = (col == row + 1).astype(cdt)

    def conv3x3(a, wb_ref):
        # out[h] = a[h-1] @ W[kh=0] + a[h] @ W[kh=1] + a[h+1] @ W[kh=2]
        a = a.astype(cdt)
        a_dn = jnp.dot(sd, a, preferred_element_type=cdt)   # exact row shift
        a_up = jnp.dot(su, a, preferred_element_type=cdt)
        return (jnp.dot(a_dn, wb_ref[0], preferred_element_type=jnp.float32)
                + jnp.dot(a, wb_ref[1], preferred_element_type=jnp.float32)
                + jnp.dot(a_up, wb_ref[2], preferred_element_type=jnp.float32))

    def inorm(a, r_ref, rt_ref):
        # a: (H, W*C) f32. Per-channel mean/var over all H*W spatial positions
        # in one sweep (sum + sum-of-squares), stats gathered / broadcast via
        # tiny matmuls so channels never leave the lane-dense layout.
        c = r_ref.shape[1]
        wdim = r_ref.shape[0] // c
        inv_hw = 1.0 / float(a.shape[0] * wdim)
        s = jnp.sum(a, axis=0, keepdims=True)            # (1, W*C)
        q = jnp.sum(a * a, axis=0, keepdims=True)        # (1, W*C)
        mean = jnp.dot(s, r_ref[...], preferred_element_type=jnp.float32) * inv_hw
        msq = jnp.dot(q, r_ref[...], preferred_element_type=jnp.float32) * inv_hw
        var = jnp.maximum(msq - mean * mean, 0.0)        # guard tiny negatives
        inv = jax.lax.rsqrt(var + EPS)                   # (1, C)
        scale = jnp.dot(inv, rt_ref[...], preferred_element_type=jnp.float32)
        shift = jnp.dot(-mean * inv, rt_ref[...], preferred_element_type=jnp.float32)
        return a * scale + shift                         # (H, W*C)

    # conv1 -> IN -> ReLU
    a1 = conv3x3(xf, w1_ref)                             # (H, W*Cmid) f32
    y1 = jnp.maximum(inorm(a1, r1_ref, r1t_ref), 0.0)
    # conv2 -> IN
    a2 = conv3x3(y1, w2_ref)                             # (H, W*Cout) f32
    y2 = inorm(a2, r2_ref, r2t_ref)
    # 1x1 skip conv (with bias) + residual ReLU
    skip = jnp.dot(xf.astype(cdt), ws_ref[...],
                   preferred_element_type=jnp.float32) + b_ref[...]
    out_ref[0, :, :] = jnp.maximum(y2 + skip, 0.0)       # lane-dense store


def _band_weights(w_oihw, width, dtype):
    """(O, I, 3, 3) OIHW -> (3, width*I, width*O) banded block-Toeplitz weights.

    band[kh][w'*I + i, w*O + o] = w[o, i, kh, (w'-w)+1] for |w'-w| <= 1, else 0,
    so a single matmul per kernel row performs every W-direction tap including
    the zero padding at the left/right image borders.
    """
    o_, i_, kh_, kw_ = w_oihw.shape
    w_hwio = jnp.transpose(w_oihw, (2, 3, 1, 0)).astype(jnp.float32)  # (3,3,I,O)
    mats = []
    for kh in range(kh_):
        m = jnp.zeros((width * i_, width * o_), jnp.float32)
        for kw in range(kw_):
            shift = jnp.eye(width, k=1 - kw, dtype=jnp.float32)       # w' = w + kw - 1
            m = m + jnp.kron(shift, w_hwio[kh, kw])
        mats.append(m)
    return jnp.stack(mats, axis=0).astype(dtype)


def double_conv(x_nchw, w1_oihw, w2_oihw, ws_oihw, bs, *,
                compute_dtype=jnp.float32):
    """x_nchw: (N, Cin, H, W); weights in PyTorch OIHW layout. Returns NCHW.

    compute_dtype controls the matmul operand dtype (f32 by default to match
    the PyTorch reference; jnp.bfloat16 doubles MXU rate / halves DMA bytes
    while still accumulating in f32 and doing all norm math in f32).
    """
    N, Cin, H, W = x_nchw.shape
    Cmid = w1_oihw.shape[0]
    Cout = w2_oihw.shape[0]

    # ---- wrapper-side layout prep only (no activation compute, no padding) ----
    xf = jnp.transpose(x_nchw, (0, 2, 3, 1)).reshape(N, H, W * Cin)
    xf = xf.astype(compute_dtype)
    w1b = _band_weights(w1_oihw, W, compute_dtype)            # (3, W*Cin,  W*Cmid)
    w2b = _band_weights(w2_oihw, W, compute_dtype)            # (3, W*Cmid, W*Cout)
    ws_io = jnp.transpose(ws_oihw[:, :, 0, 0], (1, 0)).astype(jnp.float32)
    wsb = jnp.kron(jnp.eye(W, dtype=jnp.float32), ws_io).astype(compute_dtype)
    bias_row = jnp.tile(bs.astype(jnp.float32), W).reshape(1, W * Cout)
    r1 = jnp.tile(jnp.eye(Cmid, dtype=jnp.float32), (W, 1))   # (W*Cmid, Cmid)
    r2 = jnp.tile(jnp.eye(Cout, dtype=jnp.float32), (W, 1))   # (W*Cout, Cout)

    grid_spec = pltpu.PrefetchScalarGridSpec(
        num_scalar_prefetch=0,
        grid=(N,),
        in_specs=[
            pl.BlockSpec((1, H, W * Cin), lambda n: (n, 0, 0)),
            pl.BlockSpec((3, W * Cin, W * Cmid), lambda n: (0, 0, 0)),
            pl.BlockSpec((3, W * Cmid, W * Cout), lambda n: (0, 0, 0)),
            pl.BlockSpec((W * Cin, W * Cout), lambda n: (0, 0)),
            pl.BlockSpec((1, W * Cout), lambda n: (0, 0)),
            pl.BlockSpec((W * Cmid, Cmid), lambda n: (0, 0)),
            pl.BlockSpec((Cmid, W * Cmid), lambda n: (0, 0)),
            pl.BlockSpec((W * Cout, Cout), lambda n: (0, 0)),
            pl.BlockSpec((Cout, W * Cout), lambda n: (0, 0)),
        ],
        out_specs=pl.BlockSpec((1, H, W * Cout), lambda n: (n, 0, 0)),
    )

    out_f = pl.pallas_call(
        double_conv_kernel,
        out_shape=jax.ShapeDtypeStruct((N, H, W * Cout), jnp.float32),
        grid_spec=grid_spec,
        compiler_params=pltpu.CompilerParams(
            dimension_semantics=("parallel",),
            vmem_limit_bytes=32 * 1024 * 1024,
        ),
    )(xf, w1b, w2b, wsb, bias_row, r1, r1.T, r2, r2.T)

    # un-fold the lane-dense output: (N, H, W*Cout) -> NCHW
    return jnp.transpose(out_f.reshape(N, H, W, Cout), (0, 3, 1, 2))


def double_conv_ref(x, w1, w2, ws, bs):
    """Pure-JAX reference matching the PyTorch forward (NCHW / OIHW)."""
    conv = lambda inp, w: jax.lax.conv_general_dilated(
        inp, w, (1, 1), 'SAME', dimension_numbers=('NCHW', 'OIHW', 'NCHW'))

    def inorm(y):
        m = jnp.mean(y, axis=(2, 3), keepdims=True)
        v = jnp.mean((y - m) ** 2, axis=(2, 3), keepdims=True)
        return (y - m) * jax.lax.rsqrt(v + EPS)

    y = jax.nn.relu(inorm(conv(x, w1)))
    y = inorm(conv(y, w2))
    skip = conv(x, ws) + bs.reshape(1, -1, 1, 1)
    return jax.nn.relu(y + skip)


if __name__ == "__main__":
    N, Cin, Cmid, Cout, H, W = 2, 4, 8, 8, 16, 16

    key = jax.random.PRNGKey(0)
    kx, k1, k2, k3, k4 = jax.random.split(key, 5)
    x = jax.random.normal(kx, (N, Cin, H, W), dtype=jnp.float32)
    # deterministic synthetic parameters (PyTorch OIHW layout)
    w1 = 0.3 * jax.random.normal(k1, (Cmid, Cin, 3, 3), dtype=jnp.float32)
    w2 = 0.3 * jax.random.normal(k2, (Cout, Cmid, 3, 3), dtype=jnp.float32)
    ws = 0.3 * jax.random.normal(k3, (Cout, Cin, 1, 1), dtype=jnp.float32)
    bs = 0.1 * jax.random.normal(k4, (Cout,), dtype=jnp.float32)

    out = jax.block_until_ready(double_conv(x, w1, w2, ws, bs))
    ref = jax.block_until_ready(double_conv_ref(x, w1, w2, ws, bs))

    assert out.shape == (N, Cout, H, W)
    assert jnp.allclose(out, ref, atol=1e-4, rtol=1e-4), \
        f"max abs err {jnp.max(jnp.abs(out - ref))}"
    print("KERNEL_OK")
</pallas_src>

<mosaic_0001>
module attributes {stable_mosaic.version = 11 : i64} {
  func.func @double_conv_kernel(%arg0: i32, %arg1: memref<1x16x64xf32, #tpu.memory_space<vmem>>, %arg2: memref<3x64x128xf32, #tpu.memory_space<vmem>>, %arg3: memref<3x128x128xf32, #tpu.memory_space<vmem>>, %arg4: memref<64x128xf32, #tpu.memory_space<vmem>>, %arg5: memref<1x128xf32, #tpu.memory_space<vmem>>, %arg6: memref<128x8xf32, #tpu.memory_space<vmem>>, %arg7: memref<8x128xf32, #tpu.memory_space<vmem>>, %arg8: memref<128x8xf32, #tpu.memory_space<vmem>>, %arg9: memref<8x128xf32, #tpu.memory_space<vmem>>, %arg10: memref<1x16x128xf32, #tpu.memory_space<vmem>>) attributes {dimension_semantics = [#tpu.dimension_semantics<parallel>], iteration_bounds = array<i64: 2>, scalar_prefetch = 0 : i64, scratch_operands = 0 : i64, tpu.core_type = #tpu.core_type<tc>, window_params = [{transform_indices = @transform_0, window_bounds = array<i64: 1, 16, 64>}, {pipeline_mode = #tpu.pipeline_mode<synchronous>, transform_indices = @transform_1, window_bounds = array<i64: 3, 64, 128>}, {pipeline_mode = #tpu.pipeline_mode<synchronous>, transform_indices = @transform_2, window_bounds = array<i64: 3, 128, 128>}, {pipeline_mode = #tpu.pipeline_mode<synchronous>, transform_indices = @transform_3, window_bounds = array<i64: 64, 128>}, {pipeline_mode = #tpu.pipeline_mode<synchronous>, transform_indices = @transform_4, window_bounds = array<i64: 1, 128>}, {pipeline_mode = #tpu.pipeline_mode<synchronous>, transform_indices = @transform_5, window_bounds = array<i64: 128, 8>}, {pipeline_mode = #tpu.pipeline_mode<synchronous>, transform_indices = @transform_6, window_bounds = array<i64: 8, 128>}, {pipeline_mode = #tpu.pipeline_mode<synchronous>, transform_indices = @transform_7, window_bounds = array<i64: 128, 8>}, {pipeline_mode = #tpu.pipeline_mode<synchronous>, transform_indices = @transform_8, window_bounds = array<i64: 8, 128>}, {transform_indices = @transform_9, window_bounds = array<i64: 1, 16, 128>}]} {
    %c0 = arith.constant 0 : index
    %c0_0 = arith.constant 0 : index
    %c0_1 = arith.constant 0 : index
    %0 = vector.load %arg1[%c0, %c0_0, %c0_1] : memref<1x16x64xf32, #tpu.memory_space<vmem>>, vector<1x16x64xf32>
    %1 = vector.shape_cast %0 : vector<1x16x64xf32> to vector<16x64xf32>
    %2 = tpu.iota {dimensions = array<i32: 0>} : vector<16x16xi32>
    %3 = tpu.iota {dimensions = array<i32: 1>} : vector<16x16xi32>
    %c1_i32 = arith.constant 1 : i32
    %4 = vector.broadcast %c1_i32 : i32 to vector<16x16xi32>
    %5 = arith.subi %2, %4 : vector<16x16xi32>
    %6 = arith.cmpi eq, %3, %5 : vector<16x16xi32>
    %7 = arith.extui %6 : vector<16x16xi1> to vector<16x16xi32>
    %8 = arith.sitofp %7 : vector<16x16xi32> to vector<16x16xf32>
    %c1_i32_2 = arith.constant 1 : i32
    %9 = vector.broadcast %c1_i32_2 : i32 to vector<16x16xi32>
    %10 = arith.addi %2, %9 : vector<16x16xi32>
    %11 = arith.cmpi eq, %3, %10 : vector<16x16xi32>
    %12 = arith.extui %11 : vector<16x16xi1> to vector<16x16xi32>
    %13 = arith.sitofp %12 : vector<16x16xi32> to vector<16x16xf32>
    %cst = arith.constant dense<0.000000e+00> : vector<16x64xf32>
    %14 = tpu.matmul %8, %1, %cst {dimension_numbers = #tpu.dot_dimension_numbers<[1], [0], [0], [1], [0, 0, 1, 1], [], []>} : vector<16x16xf32>, vector<16x64xf32>, vector<16x64xf32> -> vector<16x64xf32>
    %cst_3 = arith.constant dense<0.000000e+00> : vector<16x64xf32>
    %15 = tpu.matmul %13, %1, %cst_3 {dimension_numbers = #tpu.dot_dimension_numbers<[1], [0], [0], [1], [0, 0, 1, 1], [], []>} : vector<16x16xf32>, vector<16x64xf32>, vector<16x64xf32> -> vector<16x64xf32>
    %c0_4 = arith.constant 0 : index
    %c0_5 = arith.constant 0 : index
    %c0_6 = arith.constant 0 : index
    %16 = vector.load %arg2[%c0_4, %c0_5, %c0_6] : memref<3x64x128xf32, #tpu.memory_space<vmem>>, vector<1x64x128xf32>
    %17 = vector.shape_cast %16 : vector<1x64x128xf32> to vector<64x128xf32>
    %cst_7 = arith.constant dense<0.000000e+00> : vector<16x128xf32>
    %18 = tpu.matmul %14, %17, %cst_7 {dimension_numbers = #tpu.dot_dimension_numbers<[1], [0], [0], [1], [0, 0, 1, 1], [], []>} : vector<16x64xf32>, vector<64x128xf32>, vector<16x128xf32> -> vector<16x128xf32>
    %c1 = arith.constant 1 : index
    %c0_8 = arith.constant 0 : index
    %c0_9 = arith.constant 0 : index
    %19 = vector.load %arg2[%c1, %c0_8, %c0_9] : memref<3x64x128xf32, #tpu.memory_space<vmem>>, vector<1x64x128xf32>
    %20 = vector.shape_cast %19 : vector<1x64x128xf32> to vector<64x128xf32>
    %cst_10 = arith.constant dense<0.000000e+00> : vector<16x128xf32>
    %21 = tpu.matmul %1, %20, %cst_10 {dimension_numbers = #tpu.dot_dimension_numbers<[1], [0], [0], [1], [0, 0, 1, 1], [], []>} : vector<16x64xf32>, vector<64x128xf32>, vector<16x128xf32> -> vector<16x128xf32>
    %22 = arith.addf %18, %21 : vector<16x128xf32>
    %c2 = arith.constant 2 : index
    %c0_11 = arith.constant 0 : index
    %c0_12 = arith.constant 0 : index
    %23 = vector.load %arg2[%c2, %c0_11, %c0_12] : memref<3x64x128xf32, #tpu.memory_space<vmem>>, vector<1x64x128xf32>
    %24 = vector.shape_cast %23 : vector<1x64x128xf32> to vector<64x128xf32>
    %cst_13 = arith.constant dense<0.000000e+00> : vector<16x128xf32>
    %25 = tpu.matmul %15, %24, %cst_13 {dimension_numbers = #tpu.dot_dimension_numbers<[1], [0], [0], [1], [0, 0, 1, 1], [], []>} : vector<16x64xf32>, vector<64x128xf32>, vector<16x128xf32> -> vector<16x128xf32>
    %26 = arith.addf %22, %25 : vector<16x128xf32>
    %cst_14 = arith.constant dense<0.000000e+00> : vector<128xf32>
    %27 = vector.multi_reduction <add>, %26, %cst_14 [0] : vector<16x128xf32> to vector<128xf32>
    %28 = vector.shape_cast %27 : vector<128xf32> to vector<1x128xf32>
    %29 = arith.mulf %26, %26 : vector<16x128xf32>
    %cst_15 = arith.constant dense<0.000000e+00> : vector<128xf32>
    %30 = vector.multi_reduction <add>, %29, %cst_15 [0] : vector<16x128xf32> to vector<128xf32>
    %31 = vector.shape_cast %30 : vector<128xf32> to vector<1x128xf32>
    %c0_16 = arith.constant 0 : index
    %c0_17 = arith.constant 0 : index
    %32 = vector.load %arg6[%c0_16, %c0_17] : memref<128x8xf32, #tpu.memory_space<vmem>>, vector<128x8xf32>
    %cst_18 = arith.constant dense<0.000000e+00> : vector<1x8xf32>
    %33 = tpu.matmul %28, %32, %cst_18 {dimension_numbers = #tpu.dot_dimension_numbers<[1], [0], [0], [1], [0, 0, 1, 1], [], []>} : vector<1x128xf32>, vector<128x8xf32>, vector<1x8xf32> -> vector<1x8xf32>
    %cst_19 = arith.constant 3.906250e-03 : f32
    %34 = vector.broadcast %cst_19 : f32 to vector<1x8xf32>
    %35 = arith.mulf %33, %34 : vector<1x8xf32>
    %c0_20 = arith.constant 0 : index
    %c0_21 = arith.constant 0 : index
    %36 = vector.load %arg6[%c0_20, %c0_21] : memref<128x8xf32, #tpu.memory_space<vmem>>, vector<128x8xf32>
    %cst_22 = arith.constant dense<0.000000e+00> : vector<1x8xf32>
    %37 = tpu.matmul %31, %36, %cst_22 {dimension_numbers = #tpu.dot_dimension_numbers<[1], [0], [0], [1], [0, 0, 1, 1], [], []>} : vector<1x128xf32>, vector<128x8xf32>, vector<1x8xf32> -> vector<1x8xf32>
    %cst_23 = arith.constant 3.906250e-03 : f32
    %38 = vector.broadcast %cst_23 : f32 to vector<1x8xf32>
    %39 = arith.mulf %37, %38 : vector<1x8xf32>
    %40 = arith.mulf %35, %35 : vector<1x8xf32>
    %41 = arith.subf %39, %40 : vector<1x8xf32>
    %cst_24 = arith.constant 0.000000e+00 : f32
    %42 = vector.broadcast %cst_24 : f32 to vector<1x8xf32>
    %43 = arith.maximumf %41, %42 : vector<1x8xf32>
    %cst_25 = arith.constant 9.99999974E-6 : f32
    %44 = vector.broadcast %cst_25 : f32 to vector<1x8xf32>
    %45 = arith.addf %43, %44 : vector<1x8xf32>
    %46 = math.rsqrt %45 : vector<1x8xf32>
    %c0_26 = arith.constant 0 : index
    %c0_27 = arith.constant 0 : index
    %47 = vector.load %arg7[%c0_26, %c0_27] : memref<8x128xf32, #tpu.memory_space<vmem>>, vector<8x128xf32>
    %cst_28 = arith.constant dense<0.000000e+00> : vector<1x128xf32>
    %48 = tpu.matmul %46, %47, %cst_28 {dimension_numbers = #tpu.dot_dimension_numbers<[1], [0], [0], [1], [0, 0, 1, 1], [], []>} : vector<1x8xf32>, vector<8x128xf32>, vector<1x128xf32> -> vector<1x128xf32>
    %cst_29 = arith.constant 0.000000e+00 : f32
    %49 = vector.broadcast %cst_29 : f32 to vector<1x8xf32>
    %50 = arith.subf %49, %35 : vector<1x8xf32>
    %51 = arith.mulf %50, %46 : vector<1x8xf32>
    %c0_30 = arith.constant 0 : index
    %c0_31 = arith.constant 0 : index
    %52 = vector.load %arg7[%c0_30, %c0_31] : memref<8x128xf32, #tpu.memory_space<vmem>>, vector<8x128xf32>
    %cst_32 = arith.constant dense<0.000000e+00> : vector<1x128xf32>
    %53 = tpu.matmul %51, %52, %cst_32 {dimension_numbers = #tpu.dot_dimension_numbers<[1], [0], [0], [1], [0, 0, 1, 1], [], []>} : vector<1x8xf32>, vector<8x128xf32>, vector<1x128xf32> -> vector<1x128xf32>
    %54 = vector.broadcast %48 : vector<1x128xf32> to vector<16x128xf32>
    %55 = arith.mulf %26, %54 : vector<16x128xf32>
    %56 = vector.broadcast %53 : vector<1x128xf32> to vector<16x128xf32>
    %57 = arith.addf %55, %56 : vector<16x128xf32>
    %cst_33 = arith.constant 0.000000e+00 : f32
    %58 = vector.broadcast %cst_33 : f32 to vector<16x128xf32>
    %59 = arith.maximumf %57, %58 : vector<16x128xf32>
    %cst_34 = arith.constant dense<0.000000e+00> : vector<16x128xf32>
    %60 = tpu.matmul %8, %59, %cst_34 {dimension_numbers = #tpu.dot_dimension_numbers<[1], [0], [0], [1], [0, 0, 1, 1], [], []>} : vector<16x16xf32>, vector<16x128xf32>, vector<16x128xf32> -> vector<16x128xf32>
    %cst_35 = arith.constant dense<0.000000e+00> : vector<16x128xf32>
    %61 = tpu.matmul %13, %59, %cst_35 {dimension_numbers = #tpu.dot_dimension_numbers<[1], [0], [0], [1], [0, 0, 1, 1], [], []>} : vector<16x16xf32>, vector<16x128xf32>, vector<16x128xf32> -> vector<16x128xf32>
    %c0_36 = arith.constant 0 : index
    %c0_37 = arith.constant 0 : index
    %c0_38 = arith.constant 0 : index
    %62 = vector.load %arg3[%c0_36, %c0_37, %c0_38] : memref<3x128x128xf32, #tpu.memory_space<vmem>>, vector<1x128x128xf32>
    %63 = vector.shape_cast %62 : vector<1x128x128xf32> to vector<128x128xf32>
    %cst_39 = arith.constant dense<0.000000e+00> : vector<16x128xf32>
    %64 = tpu.matmul %60, %63, %cst_39 {dimension_numbers = #tpu.dot_dimension_numbers<[1], [0], [0], [1], [0, 0, 1, 1], [], []>} : vector<16x128xf32>, vector<128x128xf32>, vector<16x128xf32> -> vector<16x128xf32>
    %c1_40 = arith.constant 1 : index
    %c0_41 = arith.constant 0 : index
    %c0_42 = arith.constant 0 : index
    %65 = vector.load %arg3[%c1_40, %c0_41, %c0_42] : memref<3x128x128xf32, #tpu.memory_space<vmem>>, vector<1x128x128xf32>
    %66 = vector.shape_cast %65 : vector<1x128x128xf32> to vector<128x128xf32>
    %cst_43 = arith.constant dense<0.000000e+00> : vector<16x128xf32>
    %67 = tpu.matmul %59, %66, %cst_43 {dimension_numbers = #tpu.dot_dimension_numbers<[1], [0], [0], [1], [0, 0, 1, 1], [], []>} : vector<16x128xf32>, vector<128x128xf32>, vector<16x128xf32> -> vector<16x128xf32>
    %68 = arith.addf %64, %67 : vector<16x128xf32>
    %c2_44 = arith.constant 2 : index
    %c0_45 = arith.constant 0 : index
    %c0_46 = arith.constant 0 : index
    %69 = vector.load %arg3[%c2_44, %c0_45, %c0_46] : memref<3x128x128xf32, #tpu.memory_space<vmem>>, vector<1x128x128xf32>
    %70 = vector.shape_cast %69 : vector<1x128x128xf32> to vector<128x128xf32>
    %cst_47 = arith.constant dense<0.000000e+00> : vector<16x128xf32>
    %71 = tpu.matmul %61, %70, %cst_47 {dimension_numbers = #tpu.dot_dimension_numbers<[1], [0], [0], [1], [0, 0, 1, 1], [], []>} : vector<16x128xf32>, vector<128x128xf32>, vector<16x128xf32> -> vector<16x128xf32>
    %72 = arith.addf %68, %71 : vector<16x128xf32>
    %cst_48 = arith.constant dense<0.000000e+00> : vector<128xf32>
    %73 = vector.multi_reduction <add>, %72, %cst_48 [0] : vector<16x128xf32> to vector<128xf32>
    %74 = vector.shape_cast %73 : vector<128xf32> to vector<1x128xf32>
    %75 = arith.mulf %72, %72 : vector<16x128xf32>
    %cst_49 = arith.constant dense<0.000000e+00> : vector<128xf32>
    %76 = vector.multi_reduction <add>, %75, %cst_49 [0] : vector<16x128xf32> to vector<128xf32>
    %77 = vector.shape_cast %76 : vector<128xf32> to vector<1x128xf32>
    %c0_50 = arith.constant 0 : index
    %c0_51 = arith.constant 0 : index
    %78 = vector.load %arg8[%c0_50, %c0_51] : memref<128x8xf32, #tpu.memory_space<vmem>>, vector<128x8xf32>
    %cst_52 = arith.constant dense<0.000000e+00> : vector<1x8xf32>
    %79 = tpu.matmul %74, %78, %cst_52 {dimension_numbers = #tpu.dot_dimension_numbers<[1], [0], [0], [1], [0, 0, 1, 1], [], []>} : vector<1x128xf32>, vector<128x8xf32>, vector<1x8xf32> -> vector<1x8xf32>
    %cst_53 = arith.constant 3.906250e-03 : f32
    %80 = vector.broadcast %cst_53 : f32 to vector<1x8xf32>
    %81 = arith.mulf %79, %80 : vector<1x8xf32>
    %c0_54 = arith.constant 0 : index
    %c0_55 = arith.constant 0 : index
    %82 = vector.load %arg8[%c0_54, %c0_55] : memref<128x8xf32, #tpu.memory_space<vmem>>, vector<128x8xf32>
    %cst_56 = arith.constant dense<0.000000e+00> : vector<1x8xf32>
    %83 = tpu.matmul %77, %82, %cst_56 {dimension_numbers = #tpu.dot_dimension_numbers<[1], [0], [0], [1], [0, 0, 1, 1], [], []>} : vector<1x128xf32>, vector<128x8xf32>, vector<1x8xf32> -> vector<1x8xf32>
    %cst_57 = arith.constant 3.906250e-03 : f32
    %84 = vector.broadcast %cst_57 : f32 to vector<1x8xf32>
    %85 = arith.mulf %83, %84 : vector<1x8xf32>
    %86 = arith.mulf %81, %81 : vector<1x8xf32>
    %87 = arith.subf %85, %86 : vector<1x8xf32>
    %cst_58 = arith.constant 0.000000e+00 : f32
    %88 = vector.broadcast %cst_58 : f32 to vector<1x8xf32>
    %89 = arith.maximumf %87, %88 : vector<1x8xf32>
    %cst_59 = arith.constant 9.99999974E-6 : f32
    %90 = vector.broadcast %cst_59 : f32 to vector<1x8xf32>
    %91 = arith.addf %89, %90 : vector<1x8xf32>
    %92 = math.rsqrt %91 : vector<1x8xf32>
    %c0_60 = arith.constant 0 : index
    %c0_61 = arith.constant 0 : index
    %93 = vector.load %arg9[%c0_60, %c0_61] : memref<8x128xf32, #tpu.memory_space<vmem>>, vector<8x128xf32>
    %cst_62 = arith.constant dense<0.000000e+00> : vector<1x128xf32>
    %94 = tpu.matmul %92, %93, %cst_62 {dimension_numbers = #tpu.dot_dimension_numbers<[1], [0], [0], [1], [0, 0, 1, 1], [], []>} : vector<1x8xf32>, vector<8x128xf32>, vector<1x128xf32> -> vector<1x128xf32>
    %cst_63 = arith.constant 0.000000e+00 : f32
    %95 = vector.broadcast %cst_63 : f32 to vector<1x8xf32>
    %96 = arith.subf %95, %81 : vector<1x8xf32>
    %97 = arith.mulf %96, %92 : vector<1x8xf32>
    %c0_64 = arith.constant 0 : index
    %c0_65 = arith.constant 0 : index
    %98 = vector.load %arg9[%c0_64, %c0_65] : memref<8x128xf32, #tpu.memory_space<vmem>>, vector<8x128xf32>
    %cst_66 = arith.constant dense<0.000000e+00> : vector<1x128xf32>
    %99 = tpu.matmul %97, %98, %cst_66 {dimension_numbers = #tpu.dot_dimension_numbers<[1], [0], [0], [1], [0, 0, 1, 1], [], []>} : vector<1x8xf32>, vector<8x128xf32>, vector<1x128xf32> -> vector<1x128xf32>
    %100 = vector.broadcast %94 : vector<1x128xf32> to vector<16x128xf32>
    %101 = arith.mulf %72, %100 : vector<16x128xf32>
    %102 = vector.broadcast %99 : vector<1x128xf32> to vector<16x128xf32>
    %103 = arith.addf %101, %102 : vector<16x128xf32>
    %c0_67 = arith.constant 0 : index
    %c0_68 = arith.constant 0 : index
    %104 = vector.load %arg4[%c0_67, %c0_68] : memref<64x128xf32, #tpu.memory_space<vmem>>, vector<64x128xf32>
    %cst_69 = arith.constant dense<0.000000e+00> : vector<16x128xf32>
    %105 = tpu.matmul %1, %104, %cst_69 {dimension_numbers = #tpu.dot_dimension_numbers<[1], [0], [0], [1], [0, 0, 1, 1], [], []>} : vector<16x64xf32>, vector<64x128xf32>, vector<16x128xf32> -> vector<16x128xf32>
    %c0_70 = arith.constant 0 : index
    %c0_71 = arith.constant 0 : index
    %106 = vector.load %arg5[%c0_70, %c0_71] : memref<1x128xf32, #tpu.memory_space<vmem>>, vector<1x128xf32>
    %107 = vector.broadcast %106 : vector<1x128xf32> to vector<16x128xf32>
    %108 = arith.addf %105, %107 : vector<16x128xf32>
    %109 = arith.addf %103, %108 : vector<16x128xf32>
    %cst_72 = arith.constant 0.000000e+00 : f32
    %110 = vector.broadcast %cst_72 : f32 to vector<16x128xf32>
    %111 = arith.maximumf %109, %110 : vector<16x128xf32>
    %c0_73 = arith.constant 0 : index
    %c0_74 = arith.constant 0 : index
    %c0_75 = arith.constant 0 : index
    %112 = vector.load %arg10[%c0_73, %c0_74, %c0_75] : memref<1x16x128xf32, #tpu.memory_space<vmem>>, vector<1x16x128xf32>
    %113 = vector.shape_cast %112 : vector<1x16x128xf32> to vector<16x128xf32>
    %114 = vector.shape_cast %111 : vector<16x128xf32> to vector<1x16x128xf32>
    tpu.vector_store %arg10[%c0_73, %c0_74, %c0_75], %114 {strides = array<i32>} : memref<1x16x128xf32, #tpu.memory_space<vmem>>, vector<1x16x128xf32>,
    return
  }
  func.func @transform_0(%arg0: i32) -> (i32, i32, i32) {
    %c0_i32 = arith.constant 0 : i32
    %c0_i32_0 = arith.constant 0 : i32
    %c0_i32_1 = arith.constant 0 : i32
    return %arg0, %c0_i32, %c0_i32_0 : i32, i32, i32
  }
  func.func @transform_1(%arg0: i32) -> (i32, i32, i32) {
    %c0_i32 = arith.constant 0 : i32
    %c0_i32_0 = arith.constant 0 : i32
    %c0_i32_1 = arith.constant 0 : i32
    %c0_i32_2 = arith.constant 0 : i32
    return %c0_i32, %c0_i32_0, %c0_i32_1 : i32, i32, i32
  }
  func.func @transform_2(%arg0: i32) -> (i32, i32, i32) {
    %c0_i32 = arith.constant 0 : i32
    %c0_i32_0 = arith.constant 0 : i32
    %c0_i32_1 = arith.constant 0 : i32
    %c0_i32_2 = arith.constant 0 : i32
    return %c0_i32, %c0_i32_0, %c0_i32_1 : i32, i32, i32
  }
  func.func @transform_3(%arg0: i32) -> (i32, i32) {
    %c0_i32 = arith.constant 0 : i32
    %c0_i32_0 = arith.constant 0 : i32
    %c0_i32_1 = arith.constant 0 : i32
    return %c0_i32, %c0_i32_0 : i32, i32
  }
  func.func @transform_4(%arg0: i32) -> (i32, i32) {
    %c0_i32 = arith.constant 0 : i32
    %c0_i32_0 = arith.constant 0 : i32
    %c0_i32_1 = arith.constant 0 : i32
    return %c0_i32, %c0_i32_0 : i32, i32
  }
  func.func @transform_5(%arg0: i32) -> (i32, i32) {
    %c0_i32 = arith.constant 0 : i32
    %c0_i32_0 = arith.constant 0 : i32
    %c0_i32_1 = arith.constant 0 : i32
    return %c0_i32, %c0_i32_0 : i32, i32
  }
  func.func @transform_6(%arg0: i32) -> (i32, i32) {
    %c0_i32 = arith.constant 0 : i32
    %c0_i32_0 = arith.constant 0 : i32
    %c0_i32_1 = arith.constant 0 : i32
    return %c0_i32, %c0_i32_0 : i32, i32
  }
  func.func @transform_7(%arg0: i32) -> (i32, i32) {
    %c0_i32 = arith.constant 0 : i32
    %c0_i32_0 = arith.constant 0 : i32
    %c0_i32_1 = arith.constant 0 : i32
    return %c0_i32, %c0_i32_0 : i32, i32
  }
  func.func @transform_8(%arg0: i32) -> (i32, i32) {
    %c0_i32 = arith.constant 0 : i32
    %c0_i32_0 = arith.constant 0 : i32
    %c0_i32_1 = arith.constant 0 : i32
    return %c0_i32, %c0_i32_0 : i32, i32
  }
  func.func @transform_9(%arg0: i32) -> (i32, i32, i32) {
    %c0_i32 = arith.constant 0 : i32
    %c0_i32_0 = arith.constant 0 : i32
    %c0_i32_1 = arith.constant 0 : i32
    return %arg0, %c0_i32, %c0_i32_0 : i32, i32, i32
  }
}

</mosaic_0001>

<llo_original>
// kernel: tpu_custom_call.1
$region0: #{tpu_custom_call.1}
  #allocation0 [shape = 'u32[]', space=smem, size = 0x4, offset = 0x4, fixed_abs, tag = 'smem constant byte address 0x4 - core index']
  #allocation1 [shape = 'u32[144,128]{1,0:T(1,128)}', space=vmem, size = 0x12000, scoped, tag = 'internal scratch']
  %s0 = inlined_call_operand.hbm [shape: f32[2,16,64], index: 0, kind: input, shape index: {}]
  %s1 = inlined_call_operand.vmem [shape: f32[3,64,128], index: 1, kind: input, shape index: {}]
  %s2 = inlined_call_operand.hbm [shape: f32[3,128,128], index: 2, kind: input, shape index: {}]
  %s3 = inlined_call_operand.vmem [shape: f32[64,128], index: 3, kind: input, shape index: {}]
  %s4 = inlined_call_operand.vmem [shape: f32[1,128], index: 4, kind: input, shape index: {}]
  %s5 = inlined_call_operand.vmem [shape: f32[128,8], index: 5, kind: input, shape index: {}]
  %s6 = inlined_call_operand.vmem [shape: f32[8,128], index: 6, kind: input, shape index: {}]
  %s7 = inlined_call_operand.vmem [shape: f32[128,8], index: 7, kind: input, shape index: {}]
  %s8 = inlined_call_operand.vmem [shape: f32[8,128], index: 8, kind: input, shape index: {}]
  %s9 = inlined_call_operand.hbm [shape: f32[2,16,128], index: 9, kind: output, shape index: {}]
  %s10 = sld [smem:[#allocation0]]
  $region77: #{tpu_custom_call.1} parent=0
    _
  %s12 = ssub.s32 1, %s10
  %s13 = scalar_select 0, %s12, %s10
  $region1: #{tpu_custom_call.1} parent=0
    #allocation2 [shape = 'u8[16384]{0}', space=vmem, size = 0x4000, scoped, tag = 'input window, operand 0']
    #allocation3 [shape = 's32[2]{0}', space=sflag, size = 0x8, scoped, tag = 'scoped memory for tpu_custom_call.1']
    #allocation4 [shape = 's32[2]{0}', space=sflag, size = 0x8, scoped, tag = 'scoped memory for tpu_custom_call.1']
    #allocation5 [shape = 'u8[196608]{0}', space=vmem, size = 0x30000, scoped, tag = 'input window, operand 2, single buffered']
    #allocation6 [shape = 's32[1]{0}', space=sflag, size = 0x4, scoped, tag = 'scoped memory for tpu_custom_call.1']
    #allocation7 [shape = 'u8[16384]{0}', space=vmem, size = 0x4000, scoped, tag = 'output window, operand 0']
    %14 = vsyncpa [#allocation3], 0
    %s15 = scalar_lea.sflag [#allocation3], 1
    %16 = vsyncpa %s15, 0
    %17 = vsyncpa [#allocation6], 0
    %18 = vsyncpa [#allocation4], 0
    %s19 = scalar_lea.sflag [#allocation4], 1
    %20 = vsyncpa %s19, 0
    loop: start=0, step=1, limit=4
    $region2: #{tpu_custom_call.1} parent=1 // loop_pre_header
      _
    $region3: #{tpu_custom_call.1} parent=1 // loop_header
      %s22 = sphi 0, %s26
      %p23 = scmp.ge.s32.totalorder %s22, 4
      %s32 = sphi 0, %s34
      %s35 = sphi 0, %s32
      %s36 = sphi 0, %s35
      %s52 = sphi 0, %s36
      %s56 = sphi 0, %s56
      %s58 = sphi 0, %s56
      %s59 = sphi 0, %s58
      %s73 = sphi 0, %s59
      %s77 = sphi 0, %s77
      %s79 = sphi 0, %s77
      %s80 = sphi 0, %s79
      %s94 = sphi 0, %s80
      %s98 = sphi 0, %s98
      %s100 = sphi 0, %s98
      %s101 = sphi 0, %s100
      %s115 = sphi 0, %s101
      %s119 = sphi 0, %s119
      %s121 = sphi 0, %s119
      %s122 = sphi 0, %s121
      %s136 = sphi 0, %s122
      %s140 = sphi 0, %s140
      %s142 = sphi 0, %s140
      %s143 = sphi 0, %s142
      %s157 = sphi 0, %s143
      %s161 = sphi 0, %s161
      %s163 = sphi 0, %s161
      %s164 = sphi 0, %s163
      %s178 = sphi 0, %s164
      %s182 = sphi 0, %s182
      %s184 = sphi 0, %s182
      %s185 = sphi 0, %s184
      %s199 = sphi 0, %s185
      %s203 = sphi 0, %s203
      %s205 = sphi 0, %s203
      %s206 = sphi 0, %s205
      %s220 = sphi 0, %s206
      %s226 = sphi 0, %s228
      %s229 = sphi 0, %s226
      %s230 = sphi 0, %s229
      %s246 = sphi 0, %s230
    $region4: #{tpu_custom_call.1} parent=1 // loop_header_branch
      %25 = sbr.rel (%p23) target = $region8
    $region5: #{tpu_custom_call.1} parent=1 // loop_body
      %s27 = ssub.s32 %s22, 1
      %s28 = ssub.s32 %s22, 2
      %s29 = sadd.s32 %s22, 1
      %s30 = ssub.s32 %s22, %s29
      %p31 = scmp.eq.s32.totalorder %s30, 0
      %s33 = sadd.s32 %s32, 1
      %s34 = scalar_select %p31, %s32, %s33
      %p37 = pneg %p31
      %p38 = scmp.eq.s32.totalorder %s22, 1
      %p39 = por %p37, %p38
      %p40 = scmp.ne.s32.totalorder %s32, %s35
      %p41 = scmp.eq.s32.totalorder %s22, 0
      %p42 = por %p40, %p41
      %p43 = scmp.ne.s32.totalorder %s32, %s35
      %p44 = scmp.eq.s32.totalorder %s27, 1
      %p45 = por %p43, %p44
      %p46 = scmp.ne.s32.totalorder %s35, %s36
      %p47 = scmp.eq.s32.totalorder %s27, 0
      %p48 = por %p46, %p47
      %p49 = scmp.ne.s32.totalorder %s35, %s36
      %p50 = scmp.eq.s32.totalorder %s28, 1
      %p51 = por %p49, %p50
      %p53 = scmp.ne.s32.totalorder %s36, %s52
      %p54 = scmp.eq.s32.totalorder %s28, 0
      %p55 = por %p53, %p54
      %s57 = sadd.s32 %s56, 1
      %p60 = scmp.eq.s32.totalorder %s22, 1
      %p61 = scmp.ne.s32.totalorder %s56, %s58
      %p62 = scmp.eq.s32.totalorder %s22, 0
      %p63 = por %p61, %p62
      %p64 = scmp.ne.s32.totalorder %s56, %s58
      %p65 = scmp.eq.s32.totalorder %s27, 1
      %p66 = por %p64, %p65
      %p67 = scmp.ne.s32.totalorder %s58, %s59
      %p68 = scmp.eq.s32.totalorder %s27, 0
      %p69 = por %p67, %p68
      %p70 = scmp.ne.s32.totalorder %s58, %s59
      %p71 = scmp.eq.s32.totalorder %s28, 1
      %p72 = por %p70, %p71
      %p74 = scmp.ne.s32.totalorder %s59, %s73
      %p75 = scmp.eq.s32.totalorder %s28, 0
      %p76 = por %p74, %p75
      %s78 = sadd.s32 %s77, 1
      %p81 = scmp.eq.s32.totalorder %s22, 1
      %p82 = scmp.ne.s32.totalorder %s77, %s79
      %p83 = scmp.eq.s32.totalorder %s22, 0
      %p84 = por %p82, %p83
      %p85 = scmp.ne.s32.totalorder %s77, %s79
      %p86 = scmp.eq.s32.totalorder %s27, 1
      %p87 = por %p85, %p86
      %p88 = scmp.ne.s32.totalorder %s79, %s80
      %p89 = scmp.eq.s32.totalorder %s27, 0
      %p90 = por %p88, %p89
      %p91 = scmp.ne.s32.totalorder %s79, %s80
      %p92 = scmp.eq.s32.totalorder %s28, 1
      %p93 = por %p91, %p92
      %p95 = scmp.ne.s32.totalorder %s80, %s94
      %p96 = scmp.eq.s32.totalorder %s28, 0
      %p97 = por %p95, %p96
      %s99 = sadd.s32 %s98, 1
      %p102 = scmp.eq.s32.totalorder %s22, 1
      %p103 = scmp.ne.s32.totalorder %s98, %s100
      %p104 = scmp.eq.s32.totalorder %s22, 0
      %p105 = por %p103, %p104
      %p106 = scmp.ne.s32.totalorder %s98, %s100
      %p107 = scmp.eq.s32.totalorder %s27, 1
      %p108 = por %p106, %p107
      %p109 = scmp.ne.s32.totalorder %s100, %s101
      %p110 = scmp.eq.s32.totalorder %s27, 0
      %p111 = por %p109, %p110
      %p112 = scmp.ne.s32.totalorder %s100, %s101
      %p113 = scmp.eq.s32.totalorder %s28, 1
      %p114 = por %p112, %p113
      %p116 = scmp.ne.s32.totalorder %s101, %s115
      %p117 = scmp.eq.s32.totalorder %s28, 0
      %p118 = por %p116, %p117
      %s120 = sadd.s32 %s119, 1
      %p123 = scmp.eq.s32.totalorder %s22, 1
      %p124 = scmp.ne.s32.totalorder %s119, %s121
      %p125 = scmp.eq.s32.totalorder %s22, 0
      %p126 = por %p124, %p125
      %p127 = scmp.ne.s32.totalorder %s119, %s121
      %p128 = scmp.eq.s32.totalorder %s27, 1
      %p129 = por %p127, %p128
      %p130 = scmp.ne.s32.totalorder %s121, %s122
      %p131 = scmp.eq.s32.totalorder %s27, 0
      %p132 = por %p130, %p131
      %p133 = scmp.ne.s32.totalorder %s121, %s122
      %p134 = scmp.eq.s32.totalorder %s28, 1
      %p135 = por %p133, %p134
      %p137 = scmp.ne.s32.totalorder %s122, %s136
      %p138 = scmp.eq.s32.totalorder %s28, 0
      %p139 = por %p137, %p138
      %s141 = sadd.s32 %s140, 1
      %p144 = scmp.eq.s32.totalorder %s22, 1
      %p145 = scmp.ne.s32.totalorder %s140, %s142
      %p146 = scmp.eq.s32.totalorder %s22, 0
      %p147 = por %p145, %p146
      %p148 = scmp.ne.s32.totalorder %s140, %s142
      %p149 = scmp.eq.s32.totalorder %s27, 1
      %p150 = por %p148, %p149
      %p151 = scmp.ne.s32.totalorder %s142, %s143
      %p152 = scmp.eq.s32.totalorder %s27, 0
      %p153 = por %p151, %p152
      %p154 = scmp.ne.s32.totalorder %s142, %s143
      %p155 = scmp.eq.s32.totalorder %s28, 1
      %p156 = por %p154, %p155
      %p158 = scmp.ne.s32.totalorder %s143, %s157
      %p159 = scmp.eq.s32.totalorder %s28, 0
      %p160 = por %p158, %p159
      %s162 = sadd.s32 %s161, 1
      %p165 = scmp.eq.s32.totalorder %s22, 1
      %p166 = scmp.ne.s32.totalorder %s161, %s163
      %p167 = scmp.eq.s32.totalorder %s22, 0
      %p168 = por %p166, %p167
      %p169 = scmp.ne.s32.totalorder %s161, %s163
      %p170 = scmp.eq.s32.totalorder %s27, 1
      %p171 = por %p169, %p170
      %p172 = scmp.ne.s32.totalorder %s163, %s164
      %p173 = scmp.eq.s32.totalorder %s27, 0
      %p174 = por %p172, %p173
      %p175 = scmp.ne.s32.totalorder %s163, %s164
      %p176 = scmp.eq.s32.totalorder %s28, 1
      %p177 = por %p175, %p176
      %p179 = scmp.ne.s32.totalorder %s164, %s178
      %p180 = scmp.eq.s32.totalorder %s28, 0
      %p181 = por %p179, %p180
      %s183 = sadd.s32 %s182, 1
      %p186 = scmp.eq.s32.totalorder %s22, 1
      %p187 = scmp.ne.s32.totalorder %s182, %s184
      %p188 = scmp.eq.s32.totalorder %s22, 0
      %p189 = por %p187, %p188
      %p190 = scmp.ne.s32.totalorder %s182, %s184
      %p191 = scmp.eq.s32.totalorder %s27, 1
      %p192 = por %p190, %p191
      %p193 = scmp.ne.s32.totalorder %s184, %s185
      %p194 = scmp.eq.s32.totalorder %s27, 0
      %p195 = por %p193, %p194
      %p196 = scmp.ne.s32.totalorder %s184, %s185
      %p197 = scmp.eq.s32.totalorder %s28, 1
      %p198 = por %p196, %p197
      %p200 = scmp.ne.s32.totalorder %s185, %s199
      %p201 = scmp.eq.s32.totalorder %s28, 0
      %p202 = por %p200, %p201
      %s204 = sadd.s32 %s203, 1
      %p207 = scmp.eq.s32.totalorder %s22, 1
      %p208 = scmp.ne.s32.totalorder %s203, %s205
      %p209 = scmp.eq.s32.totalorder %s22, 0
      %p210 = por %p208, %p209
      %p211 = scmp.ne.s32.totalorder %s203, %s205
      %p212 = scmp.eq.s32.totalorder %s27, 1
      %p213 = por %p211, %p212
      %p214 = scmp.ne.s32.totalorder %s205, %s206
      %p215 = scmp.eq.s32.totalorder %s27, 0
      %p216 = por %p214, %p215
      %p217 = scmp.ne.s32.totalorder %s205, %s206
      %p218 = scmp.eq.s32.totalorder %s28, 1
      %p219 = por %p217, %p218
      %p221 = scmp.ne.s32.totalorder %s206, %s220
      %p222 = scmp.eq.s32.totalorder %s28, 0
      %p223 = por %p221, %p222
      %s224 = ssub.s32 %s22, %s29
      %p225 = scmp.eq.s32.totalorder %s224, 0
      %s227 = sadd.s32 %s226, 1
      %s228 = scalar_select %p225, %s226, %s227
      %p231 = pneg %p225
      %p232 = scmp.eq.s32.totalorder %s22, 1
      %p233 = por %p231, %p232
      %p234 = scmp.ne.s32.totalorder %s226, %s229
      %p235 = scmp.eq.s32.totalorder %s22, 0
      %p236 = por %p234, %p235
      %p237 = scmp.ne.s32.totalorder %s226, %s229
      %p238 = scmp.eq.s32.totalorder %s27, 1
      %p239 = por %p237, %p238
      %p240 = scmp.ne.s32.totalorder %s229, %s230
      %p241 = scmp.eq.s32.totalorder %s27, 0
      %p242 = por %p240, %p241
      %p243 = scmp.ne.s32.totalorder %s229, %s230
      %p244 = scmp.eq.s32.totalorder %s28, 1
      %p245 = por %p243, %p244
      %p247 = scmp.ne.s32.totalorder %s230, %s246
      %p248 = scmp.eq.s32.totalorder %s28, 0
      %p249 = por %p247, %p248
      %p250 = scmp.le.s32.totalorder 1, %s22
      %p251 = scmp.lt.s32.totalorder %s22, 3
      %p252 = pnand %p250, %p251
      %p253 = pneg %p252
      // Predicated region
      $region9: #{tpu_custom_call.1} parent=5 // pred_check
        _
      $region10: #{tpu_custom_call.1} parent=5 // pred_check_branch
        %255 = sbr.rel (%p252) target = $region12
      $region11: #{tpu_custom_call.1} parent=5 // pred_region
        %s256 = ssub.s32 %s22, 1
        // Predicated region
        $region13: #{tpu_custom_call.1} parent=11 // pred_check
          %p257 = pneg %p69
        $region14: #{tpu_custom_call.1} parent=11 // pred_check_branch
          %259 = sbr.rel (%p257) target = $region16
        $region15: #{tpu_custom_call.1} parent=11 // pred_region
          _
        $region16: #{tpu_custom_call.1} parent=11 // pred_fallthru
          _
        // Predicated region
        $region17: #{tpu_custom_call.1} parent=11 // pred_check
          %p260 = pneg %p90
        $region18: #{tpu_custom_call.1} parent=11 // pred_check_branch
          %262 = sbr.rel (%p260) target = $region20
        $region19: #{tpu_custom_call.1} parent=11 // pred_region
          %s264 = ssub.s32 6144, 6144
          %265 = vsyncadd [#allocation6], %s264
          %s266 = sshll.u32 [#allocation5], 4
          %s267 = int_to_ptr.vmem [resolvable:$true] %s266
          %272 = dma.hbm_to_vmem [thread:$0]  %s2, 6144, %s267, [#allocation6], 128, 128, 8
        $region20: #{tpu_custom_call.1} parent=11 // pred_fallthru
          _
        // Predicated region
        $region21: #{tpu_custom_call.1} parent=11 // pred_check
          %p273 = pneg %p111
        $region22: #{tpu_custom_call.1} parent=11 // pred_check_branch
          %275 = sbr.rel (%p273) target = $region24
        $region23: #{tpu_custom_call.1} parent=11 // pred_region
          _
        $region24: #{tpu_custom_call.1} parent=11 // pred_fallthru
          _
        // Predicated region
        $region25: #{tpu_custom_call.1} parent=11 // pred_check
          %p276 = pneg %p132
        $region26: #{tpu_custom_call.1} parent=11 // pred_check_branch
          %278 = sbr.rel (%p276) target = $region28
        $region27: #{tpu_custom_call.1} parent=11 // pred_region
          _
        $region28: #{tpu_custom_call.1} parent=11 // pred_fallthru
          _
        // Predicated region
        $region29: #{tpu_custom_call.1} parent=11 // pred_check
          %p279 = pneg %p153
        $region30: #{tpu_custom_call.1} parent=11 // pred_check_branch
          %281 = sbr.rel (%p279) target = $region32
        $region31: #{tpu_custom_call.1} parent=11 // pred_region
          _
        $region32: #{tpu_custom_call.1} parent=11 // pred_fallthru
          _
        // Predicated region
        $region33: #{tpu_custom_call.1} parent=11 // pred_check
          %p282 = pneg %p174
        $region34: #{tpu_custom_call.1} parent=11 // pred_check_branch
          %284 = sbr.rel (%p282) target = $region36
        $region35: #{tpu_custom_call.1} parent=11 // pred_region
          _
        $region36: #{tpu_custom_call.1} parent=11 // pred_fallthru
          _
        // Predicated region
        $region37: #{tpu_custom_call.1} parent=11 // pred_check
          %p285 = pneg %p195
        $region38: #{tpu_custom_call.1} parent=11 // pred_check_branch
          %287 = sbr.rel (%p285) target = $region40
        $region39: #{tpu_custom_call.1} parent=11 // pred_region
          _
        $region40: #{tpu_custom_call.1} parent=11 // pred_fallthru
          _
        // Predicated region
        $region41: #{tpu_custom_call.1} parent=11 // pred_check
          %p288 = pneg %p216
        $region42: #{tpu_custom_call.1} parent=11 // pred_check_branch
          %290 = sbr.rel (%p288) target = $region44
        $region43: #{tpu_custom_call.1} parent=11 // pred_region
          _
        $region44: #{tpu_custom_call.1} parent=11 // pred_fallthru
          _
      $region12: #{tpu_custom_call.1} parent=5 // pred_fallthru
        _
      %p291 = scmp.lt.s32.totalorder %s22, 2
      // Predicated region
      $region45: #{tpu_custom_call.1} parent=5 // pred_check
        %p292 = pneg %p291
      $region46: #{tpu_custom_call.1} parent=5 // pred_check_branch
        %294 = sbr.rel (%p292) target = $region48
      $region47: #{tpu_custom_call.1} parent=5 // pred_region
        // Predicated region
        $region49: #{tpu_custom_call.1} parent=47 // pred_check
          %p295 = pneg %p42
        $region50: #{tpu_custom_call.1} parent=47 // pred_check_branch
          %297 = sbr.rel (%p295) target = $region52
        $region51: #{tpu_custom_call.1} parent=47 // pred_region
          %s298 = sand.u32 %s32, 1
          %s299 = scalar_lea.sflag [#allocation3], %s298
          %s300 = sand.u32 %s32, 1
          %s301 = smul.addr %s300, 16
          %s302 = scalar_lea.vmem [#allocation2], %s301
          %s304 = ssub.s32 256, 256
          %305 = vsyncadd %s299, %s304
          %s306 = smul.addr %s22, 2
          %s307 = smul.addr %s306, 128
          %s308 = scalar_lea.hbm %s0, %s307
          %s309 = sshll.u32 %s302, 4
          %s310 = int_to_ptr.vmem [resolvable:$true] %s309
          %315 = dma.hbm_to_vmem [thread:$0]  %s308, 256, %s310, %s299, 128, 128, 8
        $region52: #{tpu_custom_call.1} parent=47 // pred_fallthru
          _
      $region48: #{tpu_custom_call.1} parent=5 // pred_fallthru
        _
      %p316 = scmp.le.s32.totalorder 1, %s22
      %p317 = scmp.lt.s32.totalorder %s22, 3
      %p318 = pnand %p316, %p317
      %p319 = pneg %p318
      // Predicated region
      $region53: #{tpu_custom_call.1} parent=5 // pred_check
        _
      $region54: #{tpu_custom_call.1} parent=5 // pred_check_branch
        %321 = sbr.rel (%p318) target = $region56
      $region55: #{tpu_custom_call.1} parent=5 // pred_region
        %s322 = ssub.s32 %s22, 1
        %s323 = sand.u32 %s35, 1
        %s324 = scalar_lea.sflag [#allocation3], %s323
        %s325 = sand.u32 %s35, 1
        %s326 = smul.addr %s325, 16
        %s327 = scalar_lea.vmem [#allocation2], %s326
        // Predicated region
        $region57: #{tpu_custom_call.1} parent=55 // pred_check
          %p328 = pneg %p48
        $region58: #{tpu_custom_call.1} parent=55 // pred_check_branch
          %330 = sbr.rel (%p328) target = $region60
        $region59: #{tpu_custom_call.1} parent=55 // pred_region
          %331 = dma.done %s324, 256
        $region60: #{tpu_custom_call.1} parent=55 // pred_fallthru
          _
        // Predicated region
        $region61: #{tpu_custom_call.1} parent=55 // pred_check
          %p332 = pneg %p90
        $region62: #{tpu_custom_call.1} parent=55 // pred_check_branch
          %334 = sbr.rel (%p332) target = $region64
        $region63: #{tpu_custom_call.1} parent=55 // pred_region
          %335 = dma.done [#allocation6], 6144
        $region64: #{tpu_custom_call.1} parent=55 // pred_fallthru
          _
        %s336 = sand.u32 %s35, 1
        %s337 = scalar_lea.sflag [#allocation3], %s336
        %s338 = sand.u32 %s35, 1
        %s339 = smul.addr %s338, 16
        %s340 = scalar_lea.vmem [#allocation2], %s339
        %p341 = pneg %p48
        %p342 = pneg %p45
        %p343 = pneg %p69
        %p344 = pneg %p66
        %p345 = pneg %p90
        %p346 = pneg %p87
        %p347 = pneg %p111
        %p348 = pneg %p108
        %p349 = pneg %p132
        %p350 = pneg %p129
        %p351 = pneg %p153
        %p352 = pneg %p150
        %p353 = pneg %p174
        %p354 = pneg %p171
        %p355 = pneg %p195
        %p356 = pneg %p192
        %p357 = pneg %p216
        %p358 = pneg %p213
        %p359 = pneg %p242
        %p360 = pneg %p239
        %s361 = sand.u32 %s229, 1
        %s362 = scalar_lea.sflag [#allocation4], %s361
        %s363 = sand.u32 %s229, 1
        %s364 = smul.addr %s363, 16
        %s365 = scalar_lea.vmem [#allocation7], %s364
        %v366 = vld [vmem:[%s327] sm:$0xff]
        %v367 = vld [vmem:[%s327 + $0x8] sm:$0xff]
        %v368 = vlaneseq
        %v369 = vshrl.u32 %v368, 7
        %v370 = vadd.s32 %v369, 8
        %v371 = vlaneseq
        %v372 = vand.u32 %v371, 127
        %v373 = vsub.s32 %v369, 1
        %v374 = vsub.s32 %v370, 1
        %vm375 = vcmp.eq.s32.totalorder %v372, %v373
        %vm376 = vcmp.eq.s32.totalorder %v372, %v374
        %v377 = vsel %vm375, 1, 0
        %v378 = vsel %vm376, 1, 0
        %v379 = vcvt.s32.f32 %v377
        %v380 = vcvt.s32.f32 %v378
        %v381 = vadd.s32 %v369, 1
        %v382 = vadd.s32 %v370, 1
        %vm383 = vcmp.eq.s32.totalorder %v372, %v381
        %vm384 = vcmp.eq.s32.totalorder %v372, %v382
        %v385 = vsel %vm383, 1, 0
        %v386 = vsel %vm384, 1, 0
        %v387 = vcvt.s32.f32 %v385
        %v388 = vcvt.s32.f32 %v386
        %vm389 = vcmask 130048
        %v391 = vsel %vm389, %v379, 0
        %v394 = vsel %vm389, %v380, 0
        %396 = vmatprep.subr.mxu0 0.0
        %397 = vmatpush1.msra.mxu0 %v366
        %398 = vmatprep.subr.mxu0 0.0
        %399 = vmatpush1.msra.mxu0 %v367
        %400 = vmatprep.subr.mxu0 0.0
        %401 = vmatpush1.msra.mxu0 0.0
        %402 = vmatprep.subr.mxu0 0.0
        %403 = vmatpush1.msra.mxu0 0.0
        %404 = vmatprep.subr.mxu0 0.0
        %405 = vmatpush1.msra.mxu0 0.0
        %406 = vmatprep.subr.mxu0 0.0
        %407 = vmatpush1.msra.mxu0 0.0
        %408 = vmatprep.subr.mxu0 0.0
        %409 = vmatpush1.msra.mxu0 0.0
        %410 = vmatprep.subr.mxu0 0.0
        %411 = vmatpush1.msra.mxu0 0.0
        %412 = vmatprep.subr.mxu0 0.0
        %413 = vmatpush1.msra.mxu0 0.0
        %414 = vmatprep.subr.mxu0 0.0
        %415 = vmatpush1.msra.mxu0 0.0
        %416 = vmatprep.subr.mxu0 0.0
        %417 = vmatpush1.msra.mxu0 0.0
        %418 = vmatprep.subr.mxu0 0.0
        %419 = vmatpush1.msra.mxu0 0.0
        %420 = vmatprep.subr.mxu0 0.0
        %421 = vmatpush1.msra.mxu0 0.0
        %422 = vmatprep.subr.mxu0 0.0
        %423 = vmatpush1.msra.mxu0 0.0
        %424 = vmatprep.subr.mxu0 0.0
        %425 = vmatpush1.msra.mxu0 0.0
        %426 = vmatprep.subr.mxu0 0.0
        %427 = vmatpush1.msra.mxu0 0.0
        %428 = vmatprep.subr.mxu0 0.0
        %429 = vmatpush1.msra.mxu0 0.0
        %430 = vmatprep.subr.mxu0 0.0
        %431 = vmatpush1.msra.mxu0 0.0
        %432 = vmatprep.subr.mxu0 0.0
        %433 = vmatpush1.msra.mxu0 0.0
        %434 = vmatprep.subr.mxu0 0.0
        %435 = vmatpush1.msra.mxu0 0.0
        %436 = vmatprep.subr.mxu0 0.0
        %437 = vmatpush1.msra.mxu0 0.0
        %438 = vmatprep.subr.mxu0 0.0
        %439 = vmatpush1.msra.mxu0 0.0
        %440 = vmatprep.subr.mxu0 0.0
        %441 = vmatpush1.msra.mxu0 0.0
        %442 = vmatprep.subr.mxu0 0.0
        %443 = vmatpush1.msra.mxu0 0.0
        %444 = vmatprep.subr.mxu0 0.0
        %445 = vmatpush1.msra.mxu0 0.0
        %446 = vmatprep.subr.mxu0 0.0
        %447 = vmatpush1.msra.mxu0 0.0
        %448 = vmatprep.subr.mxu0 0.0
        %449 = vmatpush1.msra.mxu0 0.0
        %450 = vmatprep.subr.mxu0 0.0
        %451 = vmatpush1.msra.mxu0 0.0
        %452 = vmatprep.subr.mxu0 0.0
        %453 = vmatpush1.msra.mxu0 0.0
        %454 = vmatprep.subr.mxu0 0.0
        %455 = vmatpush1.msra.mxu0 0.0
        %456 = vmatprep.subr.mxu0 0.0
        %457 = vmatpush1.msra.mxu0 0.0
        %458 = vmatprep.subr.mxu0 0.0
        %459 = vmatpush1.msra.mxu0 0.0
        %460 = vmatprep.mubr.f32.mxu0 0.0
        %461 = vmatmul.mubr.f32.gmra.mrb[0].mxu0 %v391
        %v462 = vpop.f32.mrb[0].mxu0
        %v463 = vadd.f32 0.0, %v462
        %v464 = vpop.f32.mrb[0].mxu0
        %465 = vmatprep.mubr.f32.mxu0 0.0
        %466 = vmatmul.mubr.f32.gmra.mrb[0].mxu0 %v394
        %v467 = vpop.f32.mrb[0].mxu0
        %v468 = vadd.f32 0.0, %v467
        %v469 = vpop.f32.mrb[0].mxu0
        %470 = vdwg.mxu0
        %v472 = vsel %vm389, %v387, 0
        %v475 = vsel %vm389, %v388, 0
        %477 = vmatprep.subr.mxu0 0.0
        %478 = vmatpush1.msra.mxu0 %v366
        %479 = vmatprep.subr.mxu0 0.0
        %480 = vmatpush1.msra.mxu0 %v367
        %481 = vmatprep.subr.mxu0 0.0
        %482 = vmatpush1.msra.mxu0 0.0
        %483 = vmatprep.subr.mxu0 0.0
        %484 = vmatpush1.msra.mxu0 0.0
        %485 = vmatprep.subr.mxu0 0.0
        %486 = vmatpush1.msra.mxu0 0.0
        %487 = vmatprep.subr.mxu0 0.0
        %488 = vmatpush1.msra.mxu0 0.0
        %489 = vmatprep.subr.mxu0 0.0
        %490 = vmatpush1.msra.mxu0 0.0
        %491 = vmatprep.subr.mxu0 0.0
        %492 = vmatpush1.msra.mxu0 0.0
        %493 = vmatprep.subr.mxu0 0.0
        %494 = vmatpush1.msra.mxu0 0.0
        %495 = vmatprep.subr.mxu0 0.0
        %496 = vmatpush1.msra.mxu0 0.0
        %497 = vmatprep.subr.mxu0 0.0
        %498 = vmatpush1.msra.mxu0 0.0
        %499 = vmatprep.subr.mxu0 0.0
        %500 = vmatpush1.msra.mxu0 0.0
        %501 = vmatprep.subr.mxu0 0.0
        %502 = vmatpush1.msra.mxu0 0.0
        %503 = vmatprep.subr.mxu0 0.0
        %504 = vmatpush1.msra.mxu0 0.0
        %505 = vmatprep.subr.mxu0 0.0
        %506 = vmatpush1.msra.mxu0 0.0
        %507 = vmatprep.subr.mxu0 0.0
        %508 = vmatpush1.msra.mxu0 0.0
        %509 = vmatprep.subr.mxu0 0.0
        %510 = vmatpush1.msra.mxu0 0.0
        %511 = vmatprep.subr.mxu0 0.0
        %512 = vmatpush1.msra.mxu0 0.0
        %513 = vmatprep.subr.mxu0 0.0
        %514 = vmatpush1.msra.mxu0 0.0
        %515 = vmatprep.subr.mxu0 0.0
        %516 = vmatpush1.msra.mxu0 0.0
        %517 = vmatprep.subr.mxu0 0.0
        %518 = vmatpush1.msra.mxu0 0.0
        %519 = vmatprep.subr.mxu0 0.0
        %520 = vmatpush1.msra.mxu0 0.0
        %521 = vmatprep.subr.mxu0 0.0
        %522 = vmatpush1.msra.mxu0 0.0
        %523 = vmatprep.subr.mxu0 0.0
        %524 = vmatpush1.msra.mxu0 0.0
        %525 = vmatprep.subr.mxu0 0.0
        %526 = vmatpush1.msra.mxu0 0.0
        %527 = vmatprep.subr.mxu0 0.0
        %528 = vmatpush1.msra.mxu0 0.0
        %529 = vmatprep.subr.mxu0 0.0
        %530 = vmatpush1.msra.mxu0 0.0
        %531 = vmatprep.subr.mxu0 0.0
        %532 = vmatpush1.msra.mxu0 0.0
        %533 = vmatprep.subr.mxu0 0.0
        %534 = vmatpush1.msra.mxu0 0.0
        %535 = vmatprep.subr.mxu0 0.0
        %536 = vmatpush1.msra.mxu0 0.0
        %537 = vmatprep.subr.mxu0 0.0
        %538 = vmatpush1.msra.mxu0 0.0
        %539 = vmatprep.subr.mxu0 0.0
        %540 = vmatpush1.msra.mxu0 0.0
        %541 = vmatprep.mubr.f32.mxu0 0.0
        %542 = vmatmul.mubr.f32.gmra.mrb[0].mxu0 %v472
        %v543 = vpop.f32.mrb[0].mxu0
        %v544 = vadd.f32 0.0, %v543
        %v545 = vpop.f32.mrb[0].mxu0
        %546 = vmatprep.mubr.f32.mxu0 0.0
        %547 = vmatmul.mubr.f32.gmra.mrb[0].mxu0 %v475
        %v548 = vpop.f32.mrb[0].mxu0
        %v549 = vadd.f32 0.0, %v548
        %v550 = vpop.f32.mrb[0].mxu0
        %551 = vdwg.mxu0
        %v552 = vld [vmem:[%s1] sm:$0xff]
        %v553 = vld [vmem:[%s1 + $0x8] sm:$0xff]
        %v554 = vld [vmem:[%s1 + $0x10] sm:$0xff]
        %v555 = vld [vmem:[%s1 + $0x18] sm:$0xff]
        %v556 = vld [vmem:[%s1 + $0x20] sm:$0xff]
        %v557 = vld [vmem:[%s1 + $0x28] sm:$0xff]
        %v558 = vld [vmem:[%s1 + $0x30] sm:$0xff]
        %v559 = vld [vmem:[%s1 + $0x38] sm:$0xff]
        %s560 = scalar_lea.vmem %s1, 64
        %v561 = vld [vmem:[%s560] sm:$0xff]
        %v562 = vld [vmem:[%s560 + $0x8] sm:$0xff]
        %v563 = vld [vmem:[%s560 + $0x10] sm:$0xff]
        %v564 = vld [vmem:[%s560 + $0x18] sm:$0xff]
        %v565 = vld [vmem:[%s560 + $0x20] sm:$0xff]
        %v566 = vld [vmem:[%s560 + $0x28] sm:$0xff]
        %v567 = vld [vmem:[%s560 + $0x30] sm:$0xff]
        %v568 = vld [vmem:[%s560 + $0x38] sm:$0xff]
        %vm569 = vcmask 523264
        %v571 = vsel %vm569, %v366, 0
        %v574 = vsel %vm569, %v367, 0
        %576 = vmatprep.subr.mxu0 0.0
        %577 = vmatpush1.msra.mxu0 %v561
        %578 = vmatprep.subr.mxu0 0.0
        %579 = vmatpush1.msra.mxu0 %v562
        %580 = vmatprep.subr.mxu0 0.0
        %581 = vmatpush1.msra.mxu0 %v563
        %582 = vmatprep.subr.mxu0 0.0
        %583 = vmatpush1.msra.mxu0 %v564
        %584 = vmatprep.subr.mxu0 0.0
        %585 = vmatpush1.msra.mxu0 %v565
        %586 = vmatprep.subr.mxu0 0.0
        %587 = vmatpush1.msra.mxu0 %v566
        %588 = vmatprep.subr.mxu0 0.0
        %589 = vmatpush1.msra.mxu0 %v567
        %590 = vmatprep.subr.mxu0 0.0
        %591 = vmatpush1.msra.mxu0 %v568
        %592 = vmatprep.subr.mxu0 0.0
        %593 = vmatpush1.msra.mxu0 0.0
        %594 = vmatprep.subr.mxu0 0.0
        %595 = vmatpush1.msra.mxu0 0.0
        %596 = vmatprep.subr.mxu0 0.0
        %597 = vmatpush1.msra.mxu0 0.0
        %598 = vmatprep.subr.mxu0 0.0
        %599 = vmatpush1.msra.mxu0 0.0
        %600 = vmatprep.subr.mxu0 0.0
        %601 = vmatpush1.msra.mxu0 0.0
        %602 = vmatprep.subr.mxu0 0.0
        %603 = vmatpush1.msra.mxu0 0.0
        %604 = vmatprep.subr.mxu0 0.0
        %605 = vmatpush1.msra.mxu0 0.0
        %606 = vmatprep.subr.mxu0 0.0
        %607 = vmatpush1.msra.mxu0 0.0
        %608 = vmatprep.subr.mxu0 0.0
        %609 = vmatpush1.msra.mxu0 0.0
        %610 = vmatprep.subr.mxu0 0.0
        %611 = vmatpush1.msra.mxu0 0.0
        %612 = vmatprep.subr.mxu0 0.0
        %613 = vmatpush1.msra.mxu0 0.0
        %614 = vmatprep.subr.mxu0 0.0
        %615 = vmatpush1.msra.mxu0 0.0
        %616 = vmatprep.subr.mxu0 0.0
        %617 = vmatpush1.msra.mxu0 0.0
        %618 = vmatprep.subr.mxu0 0.0
        %619 = vmatpush1.msra.mxu0 0.0
        %620 = vmatprep.subr.mxu0 0.0
        %621 = vmatpush1.msra.mxu0 0.0
        %622 = vmatprep.subr.mxu0 0.0
        %623 = vmatpush1.msra.mxu0 0.0
        %624 = vmatprep.subr.mxu0 0.0
        %625 = vmatpush1.msra.mxu0 0.0
        %626 = vmatprep.subr.mxu0 0.0
        %627 = vmatpush1.msra.mxu0 0.0
        %628 = vmatprep.subr.mxu0 0.0
        %629 = vmatpush1.msra.mxu0 0.0
        %630 = vmatprep.subr.mxu0 0.0
        %631 = vmatpush1.msra.mxu0 0.0
        %632 = vmatprep.subr.mxu0 0.0
        %633 = vmatpush1.msra.mxu0 0.0
        %634 = vmatprep.subr.mxu0 0.0
        %635 = vmatpush1.msra.mxu0 0.0
        %636 = vmatprep.subr.mxu0 0.0
        %637 = vmatpush1.msra.mxu0 0.0
        %638 = vmatprep.subr.mxu0 0.0
        %639 = vmatpush1.msra.mxu0 0.0
        %640 = vmatprep.mubr.f32.mxu0 0.0
        %641 = vmatmul.mubr.f32.gmra.mrb[0].mxu0 %v571
        %v642 = vpop.f32.mrb[0].mxu0
        %v643 = vadd.f32 0.0, %v642
        %v644 = vpop.f32.mrb[0].mxu0
        %645 = vmatprep.mubr.f32.mxu0 0.0
        %646 = vmatmul.mubr.f32.gmra.mrb[0].mxu0 %v574
        %v647 = vpop.f32.mrb[0].mxu0
        %v648 = vadd.f32 0.0, %v647
        %v649 = vpop.f32.mrb[0].mxu0
        %650 = vdwg.mxu0
        %v652 = vsel %vm569, %v463, 0
        %v655 = vsel %vm569, %v468, 0
        %657 = vmatprep.subr.mxu0 0.0
        %658 = vmatpush1.msra.mxu0 %v552
        %659 = vmatprep.subr.mxu0 0.0
        %660 = vmatpush1.msra.mxu0 %v553
        %661 = vmatprep.subr.mxu0 0.0
        %662 = vmatpush1.msra.mxu0 %v554
        %663 = vmatprep.subr.mxu0 0.0
        %664 = vmatpush1.msra.mxu0 %v555
        %665 = vmatprep.subr.mxu0 0.0
        %666 = vmatpush1.msra.mxu0 %v556
        %667 = vmatprep.subr.mxu0 0.0
        %668 = vmatpush1.msra.mxu0 %v557
        %669 = vmatprep.subr.mxu0 0.0
        %670 = vmatpush1.msra.mxu0 %v558
        %671 = vmatprep.subr.mxu0 0.0
        %672 = vmatpush1.msra.mxu0 %v559
        %673 = vmatprep.subr.mxu0 0.0
        %674 = vmatpush1.msra.mxu0 0.0
        %675 = vmatprep.subr.mxu0 0.0
        %676 = vmatpush1.msra.mxu0 0.0
        %677 = vmatprep.subr.mxu0 0.0
        %678 = vmatpush1.msra.mxu0 0.0
        %679 = vmatprep.subr.mxu0 0.0
        %680 = vmatpush1.msra.mxu0 0.0
        %681 = vmatprep.subr.mxu0 0.0
        %682 = vmatpush1.msra.mxu0 0.0
        %683 = vmatprep.subr.mxu0 0.0
        %684 = vmatpush1.msra.mxu0 0.0
        %685 = vmatprep.subr.mxu0 0.0
        %686 = vmatpush1.msra.mxu0 0.0
        %687 = vmatprep.subr.mxu0 0.0
        %688 = vmatpush1.msra.mxu0 0.0
        %689 = vmatprep.subr.mxu0 0.0
        %690 = vmatpush1.msra.mxu0 0.0
        %691 = vmatprep.subr.mxu0 0.0
        %692 = vmatpush1.msra.mxu0 0.0
        %693 = vmatprep.subr.mxu0 0.0
        %694 = vmatpush1.msra.mxu0 0.0
        %695 = vmatprep.subr.mxu0 0.0
        %696 = vmatpush1.msra.mxu0 0.0
        %697 = vmatprep.subr.mxu0 0.0
        %698 = vmatpush1.msra.mxu0 0.0
        %699 = vmatprep.subr.mxu0 0.0
        %700 = vmatpush1.msra.mxu0 0.0
        %701 = vmatprep.subr.mxu0 0.0
        %702 = vmatpush1.msra.mxu0 0.0
        %703 = vmatprep.subr.mxu0 0.0
        %704 = vmatpush1.msra.mxu0 0.0
        %705 = vmatprep.subr.mxu0 0.0
        %706 = vmatpush1.msra.mxu0 0.0
        %707 = vmatprep.subr.mxu0 0.0
        %708 = vmatpush1.msra.mxu0 0.0
        %709 = vmatprep.subr.mxu0 0.0
        %710 = vmatpush1.msra.mxu0 0.0
        %711 = vmatprep.subr.mxu0 0.0
        %712 = vmatpush1.msra.mxu0 0.0
        %713 = vmatprep.subr.mxu0 0.0
        %714 = vmatpush1.msra.mxu0 0.0
        %715 = vmatprep.subr.mxu0 0.0
        %716 = vmatpush1.msra.mxu0 0.0
        %717 = vmatprep.subr.mxu0 0.0
        %718 = vmatpush1.msra.mxu0 0.0
        %719 = vmatprep.subr.mxu0 0.0
        %720 = vmatpush1.msra.mxu0 0.0
        %721 = vmatprep.mubr.f32.mxu0 0.0
        %722 = vmatmul.mubr.f32.gmra.mrb[0].mxu0 %v652
        %v723 = vpop.f32.mrb[0].mxu0
        %v724 = vadd.f32 %v643, %v723
        %v725 = vpop.f32.mrb[0].mxu0
        %726 = vmatprep.mubr.f32.mxu0 0.0
        %727 = vmatmul.mubr.f32.gmra.mrb[0].mxu0 %v655
        %v728 = vpop.f32.mrb[0].mxu0
        %v729 = vadd.f32 %v648, %v728
        %v730 = vpop.f32.mrb[0].mxu0
        %731 = vdwg.mxu0
        %s732 = scalar_lea.vmem %s1, 128
        %v733 = vld [vmem:[%s732] sm:$0xff]
        %v734 = vld [vmem:[%s732 + $0x8] sm:$0xff]
        %v735 = vld [vmem:[%s732 + $0x10] sm:$0xff]
        %v736 = vld [vmem:[%s732 + $0x18] sm:$0xff]
        %v737 = vld [vmem:[%s732 + $0x20] sm:$0xff]
        %v738 = vld [vmem:[%s732 + $0x28] sm:$0xff]
        %v739 = vld [vmem:[%s732 + $0x30] sm:$0xff]
        %v740 = vld [vmem:[%s732 + $0x38] sm:$0xff]
        %v742 = vsel %vm569, %v544, 0
        %v745 = vsel %vm569, %v549, 0
        %747 = vmatprep.subr.mxu0 0.0
        %748 = vmatpush1.msra.mxu0 %v733
        %749 = vmatprep.subr.mxu0 0.0
        %750 = vmatpush1.msra.mxu0 %v734
        %751 = vmatprep.subr.mxu0 0.0
        %752 = vmatpush1.msra.mxu0 %v735
        %753 = vmatprep.subr.mxu0 0.0
        %754 = vmatpush1.msra.mxu0 %v736
        %755 = vmatprep.subr.mxu0 0.0
        %756 = vmatpush1.msra.mxu0 %v737
        %757 = vmatprep.subr.mxu0 0.0
        %758 = vmatpush1.msra.mxu0 %v738
        %759 = vmatprep.subr.mxu0 0.0
        %760 = vmatpush1.msra.mxu0 %v739
        %761 = vmatprep.subr.mxu0 0.0
        %762 = vmatpush1.msra.mxu0 %v740
        %763 = vmatprep.subr.mxu0 0.0
        %764 = vmatpush1.msra.mxu0 0.0
        %765 = vmatprep.subr.mxu0 0.0
        %766 = vmatpush1.msra.mxu0 0.0
        %767 = vmatprep.subr.mxu0 0.0
        %768 = vmatpush1.msra.mxu0 0.0
        %769 = vmatprep.subr.mxu0 0.0
        %770 = vmatpush1.msra.mxu0 0.0
        %771 = vmatprep.subr.mxu0 0.0
        %772 = vmatpush1.msra.mxu0 0.0
        %773 = vmatprep.subr.mxu0 0.0
        %774 = vmatpush1.msra.mxu0 0.0
        %775 = vmatprep.subr.mxu0 0.0
        %776 = vmatpush1.msra.mxu0 0.0
        %777 = vmatprep.subr.mxu0 0.0
        %778 = vmatpush1.msra.mxu0 0.0
        %779 = vmatprep.subr.mxu0 0.0
        %780 = vmatpush1.msra.mxu0 0.0
        %781 = vmatprep.subr.mxu0 0.0
        %782 = vmatpush1.msra.mxu0 0.0
        %783 = vmatprep.subr.mxu0 0.0
        %784 = vmatpush1.msra.mxu0 0.0
        %785 = vmatprep.subr.mxu0 0.0
        %786 = vmatpush1.msra.mxu0 0.0
        %787 = vmatprep.subr.mxu0 0.0
        %788 = vmatpush1.msra.mxu0 0.0
        %789 = vmatprep.subr.mxu0 0.0
        %790 = vmatpush1.msra.mxu0 0.0
        %791 = vmatprep.subr.mxu0 0.0
        %792 = vmatpush1.msra.mxu0 0.0
        %793 = vmatprep.subr.mxu0 0.0
        %794 = vmatpush1.msra.mxu0 0.0
        %795 = vmatprep.subr.mxu0 0.0
        %796 = vmatpush1.msra.mxu0 0.0
        %797 = vmatprep.subr.mxu0 0.0
        %798 = vmatpush1.msra.mxu0 0.0
        %799 = vmatprep.subr.mxu0 0.0
        %800 = vmatpush1.msra.mxu0 0.0
        %801 = vmatprep.subr.mxu0 0.0
        %802 = vmatpush1.msra.mxu0 0.0
        %803 = vmatprep.subr.mxu0 0.0
        %804 = vmatpush1.msra.mxu0 0.0
        %805 = vmatprep.subr.mxu0 0.0
        %806 = vmatpush1.msra.mxu0 0.0
        %807 = vmatprep.subr.mxu0 0.0
        %808 = vmatpush1.msra.mxu0 0.0
        %809 = vmatprep.subr.mxu0 0.0
        %810 = vmatpush1.msra.mxu0 0.0
        %811 = vmatprep.mubr.f32.mxu0 0.0
        %812 = vmatmul.mubr.f32.gmra.mrb[0].mxu0 %v742
        %v813 = vpop.f32.mrb[0].mxu0
        %v814 = vadd.f32 0.0, %v813
        %v815 = vpop.f32.mrb[0].mxu0
        %816 = vmatprep.mubr.f32.mxu0 0.0
        %817 = vmatmul.mubr.f32.gmra.mrb[0].mxu0 %v745
        %v818 = vpop.f32.mrb[0].mxu0
        %v819 = vadd.f32 0.0, %v818
        %v820 = vpop.f32.mrb[0].mxu0
        %821 = vdwg.mxu0
        %v822 = vadd.f32 %v724, %v814
        %v823 = vadd.f32 %v729, %v819
        %v824 = vadd.f32 %v822, %v823
        %v825 = vrot.slane %v824, 4
        %v826 = vadd.f32 %v824, %v825
        %v827 = vrot.slane %v826, 2
        %v828 = vadd.f32 %v826, %v827
        %v829 = vrot.slane %v828, 1
        %v830 = vadd.f32 %v828, %v829
        %v831 = vmul.f32 %v822, %v822
        %v832 = vmul.f32 %v823, %v823
        %v833 = vadd.f32 %v831, %v832
        %v834 = vrot.slane %v833, 4
        %v835 = vadd.f32 %v833, %v834
        %v836 = vrot.slane %v835, 2
        %v837 = vadd.f32 %v835, %v836
        %v838 = vrot.slane %v837, 1
        %v839 = vadd.f32 %v837, %v838
        %v840 = vld [vmem:[%s5] sm:$0xff]
        %v841 = vld [vmem:[%s5 + $0x8] sm:$0xff]
        %v842 = vld [vmem:[%s5 + $0x10] sm:$0xff]
        %v843 = vld [vmem:[%s5 + $0x18] sm:$0xff]
        %v844 = vld [vmem:[%s5 + $0x20] sm:$0xff]
        %v845 = vld [vmem:[%s5 + $0x28] sm:$0xff]
        %v846 = vld [vmem:[%s5 + $0x30] sm:$0xff]
        %v847 = vld [vmem:[%s5 + $0x38] sm:$0xff]
        %v848 = vld [vmem:[%s5 + $0x40] sm:$0xff]
        %v849 = vld [vmem:[%s5 + $0x48] sm:$0xff]
        %v850 = vld [vmem:[%s5 + $0x50] sm:$0xff]
        %v851 = vld [vmem:[%s5 + $0x58] sm:$0xff]
        %v852 = vld [vmem:[%s5 + $0x60] sm:$0xff]
        %v853 = vld [vmem:[%s5 + $0x68] sm:$0xff]
        %v854 = vld [vmem:[%s5 + $0x70] sm:$0xff]
        %v855 = vld [vmem:[%s5 + $0x78] sm:$0xff]
        %856 = vmatprep.subr.mxu0 0.0
        %857 = vmatpush1.msra.mxu0 %v840
        %858 = vmatprep.subr.mxu0 0.0
        %859 = vmatpush1.msra.mxu0 %v841
        %860 = vmatprep.subr.mxu0 0.0
        %861 = vmatpush1.msra.mxu0 %v842
        %862 = vmatprep.subr.mxu0 0.0
        %863 = vmatpush1.msra.mxu0 %v843
        %864 = vmatprep.subr.mxu0 0.0
        %865 = vmatpush1.msra.mxu0 %v844
        %866 = vmatprep.subr.mxu0 0.0
        %867 = vmatpush1.msra.mxu0 %v845
        %868 = vmatprep.subr.mxu0 0.0
        %869 = vmatpush1.msra.mxu0 %v846
        %870 = vmatprep.subr.mxu0 0.0
        %871 = vmatpush1.msra.mxu0 %v847
        %872 = vmatprep.subr.mxu0 0.0
        %873 = vmatpush1.msra.mxu0 %v848
        %874 = vmatprep.subr.mxu0 0.0
        %875 = vmatpush1.msra.mxu0 %v849
        %876 = vmatprep.subr.mxu0 0.0
        %877 = vmatpush1.msra.mxu0 %v850
        %878 = vmatprep.subr.mxu0 0.0
        %879 = vmatpush1.msra.mxu0 %v851
        %880 = vmatprep.subr.mxu0 0.0
        %881 = vmatpush1.msra.mxu0 %v852
        %882 = vmatprep.subr.mxu0 0.0
        %883 = vmatpush1.msra.mxu0 %v853
        %884 = vmatprep.subr.mxu0 0.0
        %885 = vmatpush1.msra.mxu0 %v854
        %886 = vmatprep.subr.mxu0 0.0
        %887 = vmatpush1.msra.mxu0 %v855
        %888 = vmatprep.subr.mxu0 0.0
        %889 = vmatpush1.msra.mxu0 0.0
        %890 = vmatprep.subr.mxu0 0.0
        %891 = vmatpush1.msra.mxu0 0.0
        %892 = vmatprep.subr.mxu0 0.0
        %893 = vmatpush1.msra.mxu0 0.0
        %894 = vmatprep.subr.mxu0 0.0
        %895 = vmatpush1.msra.mxu0 0.0
        %896 = vmatprep.subr.mxu0 0.0
        %897 = vmatpush1.msra.mxu0 0.0
        %898 = vmatprep.subr.mxu0 0.0
        %899 = vmatpush1.msra.mxu0 0.0
        %900 = vmatprep.subr.mxu0 0.0
        %901 = vmatpush1.msra.mxu0 0.0
        %902 = vmatprep.subr.mxu0 0.0
        %903 = vmatpush1.msra.mxu0 0.0
        %904 = vmatprep.subr.mxu0 0.0
        %905 = vmatpush1.msra.mxu0 0.0
        %906 = vmatprep.subr.mxu0 0.0
        %907 = vmatpush1.msra.mxu0 0.0
        %908 = vmatprep.subr.mxu0 0.0
        %909 = vmatpush1.msra.mxu0 0.0
        %910 = vmatprep.subr.mxu0 0.0
        %911 = vmatpush1.msra.mxu0 0.0
        %912 = vmatprep.subr.mxu0 0.0
        %913 = vmatpush1.msra.mxu0 0.0
        %914 = vmatprep.subr.mxu0 0.0
        %915 = vmatpush1.msra.mxu0 0.0
        %916 = vmatprep.subr.mxu0 0.0
        %917 = vmatpush1.msra.mxu0 0.0
        %918 = vmatprep.subr.mxu0 0.0
        %919 = vmatpush1.msra.mxu0 0.0
        %920 = vmatprep.mubr.f32.mxu0 0.0
        %921 = vmatmul.mubr.f32.gmra.mrb[0].mxu0 %v830
        %v922 = vpop.f32.mrb[0].mxu0
        %v923 = vadd.f32 0.0, %v922
        %v924 = vpop.f32.mrb[0].mxu0
        %925 = vdwg.mxu0
        %v926 = vmul.f32 %v923, 0.00390625
        %927 = vmatprep.subr.mxu0 0.0
        %928 = vmatpush1.msra.mxu0 %v840
        %929 = vmatprep.subr.mxu0 0.0
        %930 = vmatpush1.msra.mxu0 %v841
        %931 = vmatprep.subr.mxu0 0.0
        %932 = vmatpush1.msra.mxu0 %v842
        %933 = vmatprep.subr.mxu0 0.0
        %934 = vmatpush1.msra.mxu0 %v843
        %935 = vmatprep.subr.mxu0 0.0
        %936 = vmatpush1.msra.mxu0 %v844
        %937 = vmatprep.subr.mxu0 0.0
        %938 = vmatpush1.msra.mxu0 %v845
        %939 = vmatprep.subr.mxu0 0.0
        %940 = vmatpush1.msra.mxu0 %v846
        %941 = vmatprep.subr.mxu0 0.0
        %942 = vmatpush1.msra.mxu0 %v847
        %943 = vmatprep.subr.mxu0 0.0
        %944 = vmatpush1.msra.mxu0 %v848
        %945 = vmatprep.subr.mxu0 0.0
        %946 = vmatpush1.msra.mxu0 %v849
        %947 = vmatprep.subr.mxu0 0.0
        %948 = vmatpush1.msra.mxu0 %v850
        %949 = vmatprep.subr.mxu0 0.0
        %950 = vmatpush1.msra.mxu0 %v851
        %951 = vmatprep.subr.mxu0 0.0
        %952 = vmatpush1.msra.mxu0 %v852
        %953 = vmatprep.subr.mxu0 0.0
        %954 = vmatpush1.msra.mxu0 %v853
        %955 = vmatprep.subr.mxu0 0.0
        %956 = vmatpush1.msra.mxu0 %v854
        %957 = vmatprep.subr.mxu0 0.0
        %958 = vmatpush1.msra.mxu0 %v855
        %959 = vmatprep.subr.mxu0 0.0
        %960 = vmatpush1.msra.mxu0 0.0
        %961 = vmatprep.subr.mxu0 0.0
        %962 = vmatpush1.msra.mxu0 0.0
        %963 = vmatprep.subr.mxu0 0.0
        %964 = vmatpush1.msra.mxu0 0.0
        %965 = vmatprep.subr.mxu0 0.0
        %966 = vmatpush1.msra.mxu0 0.0
        %967 = vmatprep.subr.mxu0 0.0
        %968 = vmatpush1.msra.mxu0 0.0
        %969 = vmatprep.subr.mxu0 0.0
        %970 = vmatpush1.msra.mxu0 0.0
        %971 = vmatprep.subr.mxu0 0.0
        %972 = vmatpush1.msra.mxu0 0.0
        %973 = vmatprep.subr.mxu0 0.0
        %974 = vmatpush1.msra.mxu0 0.0
        %975 = vmatprep.subr.mxu0 0.0
        %976 = vmatpush1.msra.mxu0 0.0
        %977 = vmatprep.subr.mxu0 0.0
        %978 = vmatpush1.msra.mxu0 0.0
        %979 = vmatprep.subr.mxu0 0.0
        %980 = vmatpush1.msra.mxu0 0.0
        %981 = vmatprep.subr.mxu0 0.0
        %982 = vmatpush1.msra.mxu0 0.0
        %983 = vmatprep.subr.mxu0 0.0
        %984 = vmatpush1.msra.mxu0 0.0
        %985 = vmatprep.subr.mxu0 0.0
        %986 = vmatpush1.msra.mxu0 0.0
        %987 = vmatprep.subr.mxu0 0.0
        %988 = vmatpush1.msra.mxu0 0.0
        %989 = vmatprep.subr.mxu0 0.0
        %990 = vmatpush1.msra.mxu0 0.0
        %991 = vmatprep.mubr.f32.mxu0 0.0
        %992 = vmatmul.mubr.f32.gmra.mrb[0].mxu0 %v839
        %v993 = vpop.f32.mrb[0].mxu0
        %v994 = vadd.f32 0.0, %v993
        %v995 = vpop.f32.mrb[0].mxu0
        %996 = vdwg.mxu0
        %v997 = vmul.f32 %v994, 0.00390625
        %v998 = vmul.f32 %v926, %v926
        %v999 = vsub.f32 %v997, %v998
        %v1000 = vmax.f32 %v999, 0.0
        %v1001 = vadd.f32 %v1000, 1e-05
        %v1002 = vrsqrt.pop %v1001
        %v1003 = vld [vmem:[%s6] sm:$0xff]
        %vm1004 = vcmask 64512
        %v1006 = vsel %vm1004, %v1002, 0
        %1008 = vmatprep.subr.mxu0 0.0
        %1009 = vmatpush1.msra.mxu0 %v1003
        %1010 = vmatprep.subr.mxu0 0.0
        %1011 = vmatpush1.msra.mxu0 0.0
        %1012 = vmatprep.subr.mxu0 0.0
        %1013 = vmatpush1.msra.mxu0 0.0
        %1014 = vmatprep.subr.mxu0 0.0
        %1015 = vmatpush1.msra.mxu0 0.0
        %1016 = vmatprep.subr.mxu0 0.0
        %1017 = vmatpush1.msra.mxu0 0.0
        %1018 = vmatprep.subr.mxu0 0.0
        %1019 = vmatpush1.msra.mxu0 0.0
        %1020 = vmatprep.subr.mxu0 0.0
        %1021 = vmatpush1.msra.mxu0 0.0
        %1022 = vmatprep.subr.mxu0 0.0
        %1023 = vmatpush1.msra.mxu0 0.0
        %1024 = vmatprep.subr.mxu0 0.0
        %1025 = vmatpush1.msra.mxu0 0.0
        %1026 = vmatprep.subr.mxu0 0.0
        %1027 = vmatpush1.msra.mxu0 0.0
        %1028 = vmatprep.subr.mxu0 0.0
        %1029 = vmatpush1.msra.mxu0 0.0
        %1030 = vmatprep.subr.mxu0 0.0
        %1031 = vmatpush1.msra.mxu0 0.0
        %1032 = vmatprep.subr.mxu0 0.0
        %1033 = vmatpush1.msra.mxu0 0.0
        %1034 = vmatprep.subr.mxu0 0.0
        %1035 = vmatpush1.msra.mxu0 0.0
        %1036 = vmatprep.subr.mxu0 0.0
        %1037 = vmatpush1.msra.mxu0 0.0
        %1038 = vmatprep.subr.mxu0 0.0
        %1039 = vmatpush1.msra.mxu0 0.0
        %1040 = vmatprep.subr.mxu0 0.0
        %1041 = vmatpush1.msra.mxu0 0.0
        %1042 = vmatprep.subr.mxu0 0.0
        %1043 = vmatpush1.msra.mxu0 0.0
        %1044 = vmatprep.subr.mxu0 0.0
        %1045 = vmatpush1.msra.mxu0 0.0
        %1046 = vmatprep.subr.mxu0 0.0
        %1047 = vmatpush1.msra.mxu0 0.0
        %1048 = vmatprep.subr.mxu0 0.0
        %1049 = vmatpush1.msra.mxu0 0.0
        %1050 = vmatprep.subr.mxu0 0.0
        %1051 = vmatpush1.msra.mxu0 0.0
        %1052 = vmatprep.subr.mxu0 0.0
        %1053 = vmatpush1.msra.mxu0 0.0
        %1054 = vmatprep.subr.mxu0 0.0
        %1055 = vmatpush1.msra.mxu0 0.0
        %1056 = vmatprep.subr.mxu0 0.0
        %1057 = vmatpush1.msra.mxu0 0.0
        %1058 = vmatprep.subr.mxu0 0.0
        %1059 = vmatpush1.msra.mxu0 0.0
        %1060 = vmatprep.subr.mxu0 0.0
        %1061 = vmatpush1.msra.mxu0 0.0
        %1062 = vmatprep.subr.mxu0 0.0
        %1063 = vmatpush1.msra.mxu0 0.0
        %1064 = vmatprep.subr.mxu0 0.0
        %1065 = vmatpush1.msra.mxu0 0.0
        %1066 = vmatprep.subr.mxu0 0.0
        %1067 = vmatpush1.msra.mxu0 0.0
        %1068 = vmatprep.subr.mxu0 0.0
        %1069 = vmatpush1.msra.mxu0 0.0
        %1070 = vmatprep.subr.mxu0 0.0
        %1071 = vmatpush1.msra.mxu0 0.0
        %1072 = vmatprep.mubr.f32.mxu0 0.0
        %1073 = vmatmul.mubr.f32.gmra.mrb[0].mxu0 %v1006
        %v1074 = vpop.f32.mrb[0].mxu0
        %v1075 = vadd.f32 0.0, %v1074
        %v1076 = vpop.f32.mrb[0].mxu0
        %1077 = vdwg.mxu0
        %v1078 = vsub.f32 0.0, %v926
        %v1079 = vmul.f32 %v1078, %v1002
        %v1081 = vsel %vm1004, %v1079, 0
        %1083 = vmatprep.subr.mxu0 0.0
        %1084 = vmatpush1.msra.mxu0 %v1003
        %1085 = vmatprep.subr.mxu0 0.0
        %1086 = vmatpush1.msra.mxu0 0.0
        %1087 = vmatprep.subr.mxu0 0.0
        %1088 = vmatpush1.msra.mxu0 0.0
        %1089 = vmatprep.subr.mxu0 0.0
        %1090 = vmatpush1.msra.mxu0 0.0
        %1091 = vmatprep.subr.mxu0 0.0
        %1092 = vmatpush1.msra.mxu0 0.0
        %1093 = vmatprep.subr.mxu0 0.0
        %1094 = vmatpush1.msra.mxu0 0.0
        %1095 = vmatprep.subr.mxu0 0.0
        %1096 = vmatpush1.msra.mxu0 0.0
        %1097 = vmatprep.subr.mxu0 0.0
        %1098 = vmatpush1.msra.mxu0 0.0
        %1099 = vmatprep.subr.mxu0 0.0
        %1100 = vmatpush1.msra.mxu0 0.0
        %1101 = vmatprep.subr.mxu0 0.0
        %1102 = vmatpush1.msra.mxu0 0.0
        %1103 = vmatprep.subr.mxu0 0.0
        %1104 = vmatpush1.msra.mxu0 0.0
        %1105 = vmatprep.subr.mxu0 0.0
        %1106 = vmatpush1.msra.mxu0 0.0
        %1107 = vmatprep.subr.mxu0 0.0
        %1108 = vmatpush1.msra.mxu0 0.0
        %1109 = vmatprep.subr.mxu0 0.0
        %1110 = vmatpush1.msra.mxu0 0.0
        %1111 = vmatprep.subr.mxu0 0.0
        %1112 = vmatpush1.msra.mxu0 0.0
        %1113 = vmatprep.subr.mxu0 0.0
        %1114 = vmatpush1.msra.mxu0 0.0
        %1115 = vmatprep.subr.mxu0 0.0
        %1116 = vmatpush1.msra.mxu0 0.0
        %1117 = vmatprep.subr.mxu0 0.0
        %1118 = vmatpush1.msra.mxu0 0.0
        %1119 = vmatprep.subr.mxu0 0.0
        %1120 = vmatpush1.msra.mxu0 0.0
        %1121 = vmatprep.subr.mxu0 0.0
        %1122 = vmatpush1.msra.mxu0 0.0
        %1123 = vmatprep.subr.mxu0 0.0
        %1124 = vmatpush1.msra.mxu0 0.0
        %1125 = vmatprep.subr.mxu0 0.0
        %1126 = vmatpush1.msra.mxu0 0.0
        %1127 = vmatprep.subr.mxu0 0.0
        %1128 = vmatpush1.msra.mxu0 0.0
        %1129 = vmatprep.subr.mxu0 0.0
        %1130 = vmatpush1.msra.mxu0 0.0
        %1131 = vmatprep.subr.mxu0 0.0
        %1132 = vmatpush1.msra.mxu0 0.0
        %1133 = vmatprep.subr.mxu0 0.0
        %1134 = vmatpush1.msra.mxu0 0.0
        %1135 = vmatprep.subr.mxu0 0.0
        %1136 = vmatpush1.msra.mxu0 0.0
        %1137 = vmatprep.subr.mxu0 0.0
        %1138 = vmatpush1.msra.mxu0 0.0
        %1139 = vmatprep.subr.mxu0 0.0
        %1140 = vmatpush1.msra.mxu0 0.0
        %1141 = vmatprep.subr.mxu0 0.0
        %1142 = vmatpush1.msra.mxu0 0.0
        %1143 = vmatprep.subr.mxu0 0.0
        %1144 = vmatpush1.msra.mxu0 0.0
        %1145 = vmatprep.subr.mxu0 0.0
        %1146 = vmatpush1.msra.mxu0 0.0
        %1147 = vmatprep.mubr.f32.mxu0 0.0
        %1148 = vmatmul.mubr.f32.gmra.mrb[0].mxu0 %v1081
        %v1149 = vpop.f32.mrb[0].mxu0
        %v1150 = vadd.f32 0.0, %v1149
        %v1151 = vpop.f32.mrb[0].mxu0
        %1152 = vdwg.mxu0
        %v1153 = vlaneseq
        %v1154 = vshrl.u32 %v1153, 7
        %v1155 = vsub.s32 0, %v1154
        %v1156 = vrot.slane %v1075, %v1155
        %v1157 = vmul.f32 %v822, %v1156
        %v1158 = vmul.f32 %v823, %v1156
        %v1159 = vlaneseq
        %v1160 = vshrl.u32 %v1159, 7
        %v1161 = vsub.s32 0, %v1160
        %v1162 = vrot.slane %v1150, %v1161
        %v1163 = vadd.f32 %v1157, %v1162
        %v1164 = vadd.f32 %v1158, %v1162
        %v1165 = vmax.f32 %v1163, 0.0
        %v1166 = vmax.f32 %v1164, 0.0
        %1167 = vmatprep.subr.mxu0 0.0
        %1168 = vmatpush1.msra.mxu0 %v1165
        %1169 = vmatprep.subr.mxu0 0.0
        %1170 = vmatpush1.msra.mxu0 %v1166
        %1171 = vmatprep.subr.mxu0 0.0
        %1172 = vmatpush1.msra.mxu0 0.0
        %1173 = vmatprep.subr.mxu0 0.0
        %1174 = vmatpush1.msra.mxu0 0.0
        %1175 = vmatprep.subr.mxu0 0.0
        %1176 = vmatpush1.msra.mxu0 0.0
        %1177 = vmatprep.subr.mxu0 0.0
        %1178 = vmatpush1.msra.mxu0 0.0
        %1179 = vmatprep.subr.mxu0 0.0
        %1180 = vmatpush1.msra.mxu0 0.0
        %1181 = vmatprep.subr.mxu0 0.0
        %1182 = vmatpush1.msra.mxu0 0.0
        %1183 = vmatprep.subr.mxu0 0.0
        %1184 = vmatpush1.msra.mxu0 0.0
        %1185 = vmatprep.subr.mxu0 0.0
        %1186 = vmatpush1.msra.mxu0 0.0
        %1187 = vmatprep.subr.mxu0 0.0
        %1188 = vmatpush1.msra.mxu0 0.0
        %1189 = vmatprep.subr.mxu0 0.0
        %1190 = vmatpush1.msra.mxu0 0.0
        %1191 = vmatprep.subr.mxu0 0.0
        %1192 = vmatpush1.msra.mxu0 0.0
        %1193 = vmatprep.subr.mxu0 0.0
        %1194 = vmatpush1.msra.mxu0 0.0
        %1195 = vmatprep.subr.mxu0 0.0
        %1196 = vmatpush1.msra.mxu0 0.0
        %1197 = vmatprep.subr.mxu0 0.0
        %1198 = vmatpush1.msra.mxu0 0.0
        %1199 = vmatprep.subr.mxu0 0.0
        %1200 = vmatpush1.msra.mxu0 0.0
        %1201 = vmatprep.subr.mxu0 0.0
        %1202 = vmatpush1.msra.mxu0 0.0
        %1203 = vmatprep.subr.mxu0 0.0
        %1204 = vmatpush1.msra.mxu0 0.0
        %1205 = vmatprep.subr.mxu0 0.0
        %1206 = vmatpush1.msra.mxu0 0.0
        %1207 = vmatprep.subr.mxu0 0.0
        %1208 = vmatpush1.msra.mxu0 0.0
        %1209 = vmatprep.subr.mxu0 0.0
        %1210 = vmatpush1.msra.mxu0 0.0
        %1211 = vmatprep.subr.mxu0 0.0
        %1212 = vmatpush1.msra.mxu0 0.0
        %1213 = vmatprep.subr.mxu0 0.0
        %1214 = vmatpush1.msra.mxu0 0.0
        %1215 = vmatprep.subr.mxu0 0.0
        %1216 = vmatpush1.msra.mxu0 0.0
        %1217 = vmatprep.subr.mxu0 0.0
        %1218 = vmatpush1.msra.mxu0 0.0
        %1219 = vmatprep.subr.mxu0 0.0
        %1220 = vmatpush1.msra.mxu0 0.0
        %1221 = vmatprep.subr.mxu0 0.0
        %1222 = vmatpush1.msra.mxu0 0.0
        %1223 = vmatprep.subr.mxu0 0.0
        %1224 = vmatpush1.msra.mxu0 0.0
        %1225 = vmatprep.subr.mxu0 0.0
        %1226 = vmatpush1.msra.mxu0 0.0
        %1227 = vmatprep.subr.mxu0 0.0
        %1228 = vmatpush1.msra.mxu0 0.0
        %1229 = vmatprep.subr.mxu0 0.0
        %1230 = vmatpush1.msra.mxu0 0.0
        %1231 = vmatprep.mubr.f32.mxu0 0.0
        %1232 = vmatmul.mubr.f32.gmra.mrb[0].mxu0 %v391
        %v1233 = vpop.f32.mrb[0].mxu0
        %v1234 = vadd.f32 0.0, %v1233
        %v1235 = vpop.f32.mrb[0].mxu0
        %1236 = vmatprep.mubr.f32.mxu0 0.0
        %1237 = vmatmul.mubr.f32.gmra.mrb[0].mxu0 %v394
        %v1238 = vpop.f32.mrb[0].mxu0
        %v1239 = vadd.f32 0.0, %v1238
        %v1240 = vpop.f32.mrb[0].mxu0
        %1241 = vdwg.mxu0
        %1242 = vmatprep.subr.mxu0 0.0
        %1243 = vmatpush1.msra.mxu0 %v1165
        %1244 = vmatprep.subr.mxu0 0.0
        %1245 = vmatpush1.msra.mxu0 %v1166
        %1246 = vmatprep.subr.mxu0 0.0
        %1247 = vmatpush1.msra.mxu0 0.0
        %1248 = vmatprep.subr.mxu0 0.0
        %1249 = vmatpush1.msra.mxu0 0.0
        %1250 = vmatprep.subr.mxu0 0.0
        %1251 = vmatpush1.msra.mxu0 0.0
        %1252 = vmatprep.subr.mxu0 0.0
        %1253 = vmatpush1.msra.mxu0 0.0
        %1254 = vmatprep.subr.mxu0 0.0
        %1255 = vmatpush1.msra.mxu0 0.0
        %1256 = vmatprep.subr.mxu0 0.0
        %1257 = vmatpush1.msra.mxu0 0.0
        %1258 = vmatprep.subr.mxu0 0.0
        %1259 = vmatpush1.msra.mxu0 0.0
        %1260 = vmatprep.subr.mxu0 0.0
        %1261 = vmatpush1.msra.mxu0 0.0
        %1262 = vmatprep.subr.mxu0 0.0
        %1263 = vmatpush1.msra.mxu0 0.0
        %1264 = vmatprep.subr.mxu0 0.0
        %1265 = vmatpush1.msra.mxu0 0.0
        %1266 = vmatprep.subr.mxu0 0.0
        %1267 = vmatpush1.msra.mxu0 0.0
        %1268 = vmatprep.subr.mxu0 0.0
        %1269 = vmatpush1.msra.mxu0 0.0
        %1270 = vmatprep.subr.mxu0 0.0
        %1271 = vmatpush1.msra.mxu0 0.0
        %1272 = vmatprep.subr.mxu0 0.0
        %1273 = vmatpush1.msra.mxu0 0.0
        %1274 = vmatprep.subr.mxu0 0.0
        %1275 = vmatpush1.msra.mxu0 0.0
        %1276 = vmatprep.subr.mxu0 0.0
        %1277 = vmatpush1.msra.mxu0 0.0
        %1278 = vmatprep.subr.mxu0 0.0
        %1279 = vmatpush1.msra.mxu0 0.0
        %1280 = vmatprep.subr.mxu0 0.0
        %1281 = vmatpush1.msra.mxu0 0.0
        %1282 = vmatprep.subr.mxu0 0.0
        %1283 = vmatpush1.msra.mxu0 0.0
        %1284 = vmatprep.subr.mxu0 0.0
        %1285 = vmatpush1.msra.mxu0 0.0
        %1286 = vmatprep.subr.mxu0 0.0
        %1287 = vmatpush1.msra.mxu0 0.0
        %1288 = vmatprep.subr.mxu0 0.0
        %1289 = vmatpush1.msra.mxu0 0.0
        %1290 = vmatprep.subr.mxu0 0.0
        %1291 = vmatpush1.msra.mxu0 0.0
        %1292 = vmatprep.subr.mxu0 0.0
        %1293 = vmatpush1.msra.mxu0 0.0
        %1294 = vmatprep.subr.mxu0 0.0
        %1295 = vmatpush1.msra.mxu0 0.0
        %1296 = vmatprep.subr.mxu0 0.0
        %1297 = vmatpush1.msra.mxu0 0.0
        %1298 = vmatprep.subr.mxu0 0.0
        %1299 = vmatpush1.msra.mxu0 0.0
        %1300 = vmatprep.subr.mxu0 0.0
        %1301 = vmatpush1.msra.mxu0 0.0
        %1302 = vmatprep.subr.mxu0 0.0
        %1303 = vmatpush1.msra.mxu0 0.0
        %1304 = vmatprep.subr.mxu0 0.0
        %1305 = vmatpush1.msra.mxu0 0.0
        %1306 = vmatprep.mubr.f32.mxu0 0.0
        %1307 = vmatmul.mubr.f32.gmra.mrb[0].mxu0 %v472
        %v1308 = vpop.f32.mrb[0].mxu0
        %v1309 = vadd.f32 0.0, %v1308
        %v1310 = vpop.f32.mrb[0].mxu0
        %1311 = vmatprep.mubr.f32.mxu0 0.0
        %1312 = vmatmul.mubr.f32.gmra.mrb[0].mxu0 %v475
        %v1313 = vpop.f32.mrb[0].mxu0
        %v1314 = vadd.f32 0.0, %v1313
        %v1315 = vpop.f32.mrb[0].mxu0
        %1316 = vdwg.mxu0
        %v1317 = vld [vmem:[#allocation5] sm:$0xff]
        %v1318 = vld [vmem:[#allocation5 + $0x8] sm:$0xff]
        %v1319 = vld [vmem:[#allocation5 + $0x10] sm:$0xff]
        %v1320 = vld [vmem:[#allocation5 + $0x18] sm:$0xff]
        %v1321 = vld [vmem:[#allocation5 + $0x20] sm:$0xff]
        %v1322 = vld [vmem:[#allocation5 + $0x28] sm:$0xff]
        %v1323 = vld [vmem:[#allocation5 + $0x30] sm:$0xff]
        %v1324 = vld [vmem:[#allocation5 + $0x38] sm:$0xff]
        %v1325 = vld [vmem:[#allocation5 + $0x40] sm:$0xff]
        %v1326 = vld [vmem:[#allocation5 + $0x48] sm:$0xff]
        %v1327 = vld [vmem:[#allocation5 + $0x50] sm:$0xff]
        %v1328 = vld [vmem:[#allocation5 + $0x58] sm:$0xff]
        %v1329 = vld [vmem:[#allocation5 + $0x60] sm:$0xff]
        %v1330 = vld [vmem:[#allocation5 + $0x68] sm:$0xff]
        %v1331 = vld [vmem:[#allocation5 + $0x70] sm:$0xff]
        %v1332 = vld [vmem:[#allocation5 + $0x78] sm:$0xff]
        %s1333 = scalar_lea.vmem [#allocation5], 128
        %v1334 = vld [vmem:[%s1333] sm:$0xff]
        %v1335 = vld [vmem:[%s1333 + $0x8] sm:$0xff]
        %v1336 = vld [vmem:[%s1333 + $0x10] sm:$0xff]
        %v1337 = vld [vmem:[%s1333 + $0x18] sm:$0xff]
        %v1338 = vld [vmem:[%s1333 + $0x20] sm:$0xff]
        %v1339 = vld [vmem:[%s1333 + $0x28] sm:$0xff]
        %v1340 = vld [vmem:[%s1333 + $0x30] sm:$0xff]
        %v1341 = vld [vmem:[%s1333 + $0x38] sm:$0xff]
        %v1342 = vld [vmem:[%s1333 + $0x40] sm:$0xff]
        %v1343 = vld [vmem:[%s1333 + $0x48] sm:$0xff]
        %v1344 = vld [vmem:[%s1333 + $0x50] sm:$0xff]
        %v1345 = vld [vmem:[%s1333 + $0x58] sm:$0xff]
        %v1346 = vld [vmem:[%s1333 + $0x60] sm:$0xff]
        %v1347 = vld [vmem:[%s1333 + $0x68] sm:$0xff]
        %v1348 = vld [vmem:[%s1333 + $0x70] sm:$0xff]
        %v1349 = vld [vmem:[%s1333 + $0x78] sm:$0xff]
        %1350 = vmatprep.subr.mxu0 0.0
        %1351 = vmatpush1.msra.mxu0 %v1334
        %1352 = vmatprep.subr.mxu0 0.0
        %1353 = vmatpush1.msra.mxu0 %v1335
        %1354 = vmatprep.subr.mxu0 0.0
        %1355 = vmatpush1.msra.mxu0 %v1336
        %1356 = vmatprep.subr.mxu0 0.0
        %1357 = vmatpush1.msra.mxu0 %v1337
        %1358 = vmatprep.subr.mxu0 0.0
        %1359 = vmatpush1.msra.mxu0 %v1338
        %1360 = vmatprep.subr.mxu0 0.0
        %1361 = vmatpush1.msra.mxu0 %v1339
        %1362 = vmatprep.subr.mxu0 0.0
        %1363 = vmatpush1.msra.mxu0 %v1340
        %1364 = vmatprep.subr.mxu0 0.0
        %1365 = vmatpush1.msra.mxu0 %v1341
        %1366 = vmatprep.subr.mxu0 0.0
        %1367 = vmatpush1.msra.mxu0 %v1342
        %1368 = vmatprep.subr.mxu0 0.0
        %1369 = vmatpush1.msra.mxu0 %v1343
        %1370 = vmatprep.subr.mxu0 0.0
        %1371 = vmatpush1.msra.mxu0 %v1344
        %1372 = vmatprep.subr.mxu0 0.0
        %1373 = vmatpush1.msra.mxu0 %v1345
        %1374 = vmatprep.subr.mxu0 0.0
        %1375 = vmatpush1.msra.mxu0 %v1346
        %1376 = vmatprep.subr.mxu0 0.0
        %1377 = vmatpush1.msra.mxu0 %v1347
        %1378 = vmatprep.subr.mxu0 0.0
        %1379 = vmatpush1.msra.mxu0 %v1348
        %1380 = vmatprep.subr.mxu0 0.0
        %1381 = vmatpush1.msra.mxu0 %v1349
        %1382 = vmatprep.subr.mxu0 0.0
        %1383 = vmatpush1.msra.mxu0 0.0
        %1384 = vmatprep.subr.mxu0 0.0
        %1385 = vmatpush1.msra.mxu0 0.0
        %1386 = vmatprep.subr.mxu0 0.0
        %1387 = vmatpush1.msra.mxu0 0.0
        %1388 = vmatprep.subr.mxu0 0.0
        %1389 = vmatpush1.msra.mxu0 0.0
        %1390 = vmatprep.subr.mxu0 0.0
        %1391 = vmatpush1.msra.mxu0 0.0
        %1392 = vmatprep.subr.mxu0 0.0
        %1393 = vmatpush1.msra.mxu0 0.0
        %1394 = vmatprep.subr.mxu0 0.0
        %1395 = vmatpush1.msra.mxu0 0.0
        %1396 = vmatprep.subr.mxu0 0.0
        %1397 = vmatpush1.msra.mxu0 0.0
        %1398 = vmatprep.subr.mxu0 0.0
        %1399 = vmatpush1.msra.mxu0 0.0
        %1400 = vmatprep.subr.mxu0 0.0
        %1401 = vmatpush1.msra.mxu0 0.0
        %1402 = vmatprep.subr.mxu0 0.0
        %1403 = vmatpush1.msra.mxu0 0.0
        %1404 = vmatprep.subr.mxu0 0.0
        %1405 = vmatpush1.msra.mxu0 0.0
        %1406 = vmatprep.subr.mxu0 0.0
        %1407 = vmatpush1.msra.mxu0 0.0
        %1408 = vmatprep.subr.mxu0 0.0
        %1409 = vmatpush1.msra.mxu0 0.0
        %1410 = vmatprep.subr.mxu0 0.0
        %1411 = vmatpush1.msra.mxu0 0.0
        %1412 = vmatprep.subr.mxu0 0.0
        %1413 = vmatpush1.msra.mxu0 0.0
        %1414 = vmatprep.mubr.f32.mxu0 0.0
        %1415 = vmatmul.mubr.f32.gmra.mrb[0].mxu0 %v1165
        %v1416 = vpop.f32.mrb[0].mxu0
        %v1417 = vadd.f32 0.0, %v1416
        %v1418 = vpop.f32.mrb[0].mxu0
        %1419 = vmatprep.mubr.f32.mxu0 0.0
        %1420 = vmatmul.mubr.f32.gmra.mrb[0].mxu0 %v1166
        %v1421 = vpop.f32.mrb[0].mxu0
        %v1422 = vadd.f32 0.0, %v1421
        %v1423 = vpop.f32.mrb[0].mxu0
        %1424 = vdwg.mxu0
        %1425 = vmatprep.subr.mxu0 0.0
        %1426 = vmatpush1.msra.mxu0 %v1317
        %1427 = vmatprep.subr.mxu0 0.0
        %1428 = vmatpush1.msra.mxu0 %v1318
        %1429 = vmatprep.subr.mxu0 0.0
        %1430 = vmatpush1.msra.mxu0 %v1319
        %1431 = vmatprep.subr.mxu0 0.0
        %1432 = vmatpush1.msra.mxu0 %v1320
        %1433 = vmatprep.subr.mxu0 0.0
        %1434 = vmatpush1.msra.mxu0 %v1321
        %1435 = vmatprep.subr.mxu0 0.0
        %1436 = vmatpush1.msra.mxu0 %v1322
        %1437 = vmatprep.subr.mxu0 0.0
        %1438 = vmatpush1.msra.mxu0 %v1323
        %1439 = vmatprep.subr.mxu0 0.0
        %1440 = vmatpush1.msra.mxu0 %v1324
        %1441 = vmatprep.subr.mxu0 0.0
        %1442 = vmatpush1.msra.mxu0 %v1325
        %1443 = vmatprep.subr.mxu0 0.0
        %1444 = vmatpush1.msra.mxu0 %v1326
        %1445 = vmatprep.subr.mxu0 0.0
        %1446 = vmatpush1.msra.mxu0 %v1327
        %1447 = vmatprep.subr.mxu0 0.0
        %1448 = vmatpush1.msra.mxu0 %v1328
        %1449 = vmatprep.subr.mxu0 0.0
        %1450 = vmatpush1.msra.mxu0 %v1329
        %1451 = vmatprep.subr.mxu0 0.0
        %1452 = vmatpush1.msra.mxu0 %v1330
        %1453 = vmatprep.subr.mxu0 0.0
        %1454 = vmatpush1.msra.mxu0 %v1331
        %1455 = vmatprep.subr.mxu0 0.0
        %1456 = vmatpush1.msra.mxu0 %v1332
        %1457 = vmatprep.subr.mxu0 0.0
        %1458 = vmatpush1.msra.mxu0 0.0
        %1459 = vmatprep.subr.mxu0 0.0
        %1460 = vmatpush1.msra.mxu0 0.0
        %1461 = vmatprep.subr.mxu0 0.0
        %1462 = vmatpush1.msra.mxu0 0.0
        %1463 = vmatprep.subr.mxu0 0.0
        %1464 = vmatpush1.msra.mxu0 0.0
        %1465 = vmatprep.subr.mxu0 0.0
        %1466 = vmatpush1.msra.mxu0 0.0
        %1467 = vmatprep.subr.mxu0 0.0
        %1468 = vmatpush1.msra.mxu0 0.0
        %1469 = vmatprep.subr.mxu0 0.0
        %1470 = vmatpush1.msra.mxu0 0.0
        %1471 = vmatprep.subr.mxu0 0.0
        %1472 = vmatpush1.msra.mxu0 0.0
        %1473 = vmatprep.subr.mxu0 0.0
        %1474 = vmatpush1.msra.mxu0 0.0
        %1475 = vmatprep.subr.mxu0 0.0
        %1476 = vmatpush1.msra.mxu0 0.0
        %1477 = vmatprep.subr.mxu0 0.0
        %1478 = vmatpush1.msra.mxu0 0.0
        %1479 = vmatprep.subr.mxu0 0.0
        %1480 = vmatpush1.msra.mxu0 0.0
        %1481 = vmatprep.subr.mxu0 0.0
        %1482 = vmatpush1.msra.mxu0 0.0
        %1483 = vmatprep.subr.mxu0 0.0
        %1484 = vmatpush1.msra.mxu0 0.0
        %1485 = vmatprep.subr.mxu0 0.0
        %1486 = vmatpush1.msra.mxu0 0.0
        %1487 = vmatprep.subr.mxu0 0.0
        %1488 = vmatpush1.msra.mxu0 0.0
        %1489 = vmatprep.mubr.f32.mxu0 0.0
        %1490 = vmatmul.mubr.f32.gmra.mrb[0].mxu0 %v1234
        %v1491 = vpop.f32.mrb[0].mxu0
        %v1492 = vadd.f32 %v1417, %v1491
        %v1493 = vpop.f32.mrb[0].mxu0
        %1494 = vmatprep.mubr.f32.mxu0 0.0
        %1495 = vmatmul.mubr.f32.gmra.mrb[0].mxu0 %v1239
        %v1496 = vpop.f32.mrb[0].mxu0
        %v1497 = vadd.f32 %v1422, %v1496
        %v1498 = vpop.f32.mrb[0].mxu0
        %1499 = vdwg.mxu0
        %s1500 = scalar_lea.vmem [#allocation5], 256
        %v1501 = vld [vmem:[%s1500] sm:$0xff]
        %v1502 = vld [vmem:[%s1500 + $0x8] sm:$0xff]
        %v1503 = vld [vmem:[%s1500 + $0x10] sm:$0xff]
        %v1504 = vld [vmem:[%s1500 + $0x18] sm:$0xff]
        %v1505 = vld [vmem:[%s1500 + $0x20] sm:$0xff]
        %v1506 = vld [vmem:[%s1500 + $0x28] sm:$0xff]
        %v1507 = vld [vmem:[%s1500 + $0x30] sm:$0xff]
        %v1508 = vld [vmem:[%s1500 + $0x38] sm:$0xff]
        %v1509 = vld [vmem:[%s1500 + $0x40] sm:$0xff]
        %v1510 = vld [vmem:[%s1500 + $0x48] sm:$0xff]
        %v1511 = vld [vmem:[%s1500 + $0x50] sm:$0xff]
        %v1512 = vld [vmem:[%s1500 + $0x58] sm:$0xff]
        %v1513 = vld [vmem:[%s1500 + $0x60] sm:$0xff]
        %v1514 = vld [vmem:[%s1500 + $0x68] sm:$0xff]
        %v1515 = vld [vmem:[%s1500 + $0x70] sm:$0xff]
        %v1516 = vld [vmem:[%s1500 + $0x78] sm:$0xff]
        %1517 = vmatprep.subr.mxu0 0.0
        %1518 = vmatpush1.msra.mxu0 %v1501
        %1519 = vmatprep.subr.mxu0 0.0
        %1520 = vmatpush1.msra.mxu0 %v1502
        %1521 = vmatprep.subr.mxu0 0.0
        %1522 = vmatpush1.msra.mxu0 %v1503
        %1523 = vmatprep.subr.mxu0 0.0
        %1524 = vmatpush1.msra.mxu0 %v1504
        %1525 = vmatprep.subr.mxu0 0.0
        %1526 = vmatpush1.msra.mxu0 %v1505
        %1527 = vmatprep.subr.mxu0 0.0
        %1528 = vmatpush1.msra.mxu0 %v1506
        %1529 = vmatprep.subr.mxu0 0.0
        %1530 = vmatpush1.msra.mxu0 %v1507
        %1531 = vmatprep.subr.mxu0 0.0
        %1532 = vmatpush1.msra.mxu0 %v1508
        %1533 = vmatprep.subr.mxu0 0.0
        %1534 = vmatpush1.msra.mxu0 %v1509
        %1535 = vmatprep.subr.mxu0 0.0
        %1536 = vmatpush1.msra.mxu0 %v1510
        %1537 = vmatprep.subr.mxu0 0.0
        %1538 = vmatpush1.msra.mxu0 %v1511
        %1539 = vmatprep.subr.mxu0 0.0
        %1540 = vmatpush1.msra.mxu0 %v1512
        %1541 = vmatprep.subr.mxu0 0.0
        %1542 = vmatpush1.msra.mxu0 %v1513
        %1543 = vmatprep.subr.mxu0 0.0
        %1544 = vmatpush1.msra.mxu0 %v1514
        %1545 = vmatprep.subr.mxu0 0.0
        %1546 = vmatpush1.msra.mxu0 %v1515
        %1547 = vmatprep.subr.mxu0 0.0
        %1548 = vmatpush1.msra.mxu0 %v1516
        %1549 = vmatprep.subr.mxu0 0.0
        %1550 = vmatpush1.msra.mxu0 0.0
        %1551 = vmatprep.subr.mxu0 0.0
        %1552 = vmatpush1.msra.mxu0 0.0
        %1553 = vmatprep.subr.mxu0 0.0
        %1554 = vmatpush1.msra.mxu0 0.0
        %1555 = vmatprep.subr.mxu0 0.0
        %1556 = vmatpush1.msra.mxu0 0.0
        %1557 = vmatprep.subr.mxu0 0.0
        %1558 = vmatpush1.msra.mxu0 0.0
        %1559 = vmatprep.subr.mxu0 0.0
        %1560 = vmatpush1.msra.mxu0 0.0
        %1561 = vmatprep.subr.mxu0 0.0
        %1562 = vmatpush1.msra.mxu0 0.0
        %1563 = vmatprep.subr.mxu0 0.0
        %1564 = vmatpush1.msra.mxu0 0.0
        %1565 = vmatprep.subr.mxu0 0.0
        %1566 = vmatpush1.msra.mxu0 0.0
        %1567 = vmatprep.subr.mxu0 0.0
        %1568 = vmatpush1.msra.mxu0 0.0
        %1569 = vmatprep.subr.mxu0 0.0
        %1570 = vmatpush1.msra.mxu0 0.0
        %1571 = vmatprep.subr.mxu0 0.0
        %1572 = vmatpush1.msra.mxu0 0.0
        %1573 = vmatprep.subr.mxu0 0.0
        %1574 = vmatpush1.msra.mxu0 0.0
        %1575 = vmatprep.subr.mxu0 0.0
        %1576 = vmatpush1.msra.mxu0 0.0
        %1577 = vmatprep.subr.mxu0 0.0
        %1578 = vmatpush1.msra.mxu0 0.0
        %1579 = vmatprep.subr.mxu0 0.0
        %1580 = vmatpush1.msra.mxu0 0.0
        %1581 = vmatprep.mubr.f32.mxu0 0.0
        %1582 = vmatmul.mubr.f32.gmra.mrb[0].mxu0 %v1309
        %v1583 = vpop.f32.mrb[0].mxu0
        %v1584 = vadd.f32 0.0, %v1583
        %v1585 = vpop.f32.mrb[0].mxu0
        %1586 = vmatprep.mubr.f32.mxu0 0.0
        %1587 = vmatmul.mubr.f32.gmra.mrb[0].mxu0 %v1314
        %v1588 = vpop.f32.mrb[0].mxu0
        %v1589 = vadd.f32 0.0, %v1588
        %v1590 = vpop.f32.mrb[0].mxu0
        %1591 = vdwg.mxu0
        %v1592 = vadd.f32 %v1492, %v1584
        %v1593 = vadd.f32 %v1497, %v1589
        %v1594 = vadd.f32 %v1592, %v1593
        %v1595 = vrot.slane %v1594, 4
        %v1596 = vadd.f32 %v1594, %v1595
        %v1597 = vrot.slane %v1596, 2
        %v1598 = vadd.f32 %v1596, %v1597
        %v1599 = vrot.slane %v1598, 1
        %v1600 = vadd.f32 %v1598, %v1599
        %v1601 = vmul.f32 %v1592, %v1592
        %v1602 = vmul.f32 %v1593, %v1593
        %v1603 = vadd.f32 %v1601, %v1602
        %v1604 = vrot.slane %v1603, 4
        %v1605 = vadd.f32 %v1603, %v1604
        %v1606 = vrot.slane %v1605, 2
        %v1607 = vadd.f32 %v1605, %v1606
        %v1608 = vrot.slane %v1607, 1
        %v1609 = vadd.f32 %v1607, %v1608
        %v1610 = vld [vmem:[%s7] sm:$0xff]
        %v1611 = vld [vmem:[%s7 + $0x8] sm:$0xff]
        %v1612 = vld [vmem:[%s7 + $0x10] sm:$0xff]
        %v1613 = vld [vmem:[%s7 + $0x18] sm:$0xff]
        %v1614 = vld [vmem:[%s7 + $0x20] sm:$0xff]
        %v1615 = vld [vmem:[%s7 + $0x28] sm:$0xff]
        %v1616 = vld [vmem:[%s7 + $0x30] sm:$0xff]
        %v1617 = vld [vmem:[%s7 + $0x38] sm:$0xff]
        %v1618 = vld [vmem:[%s7 + $0x40] sm:$0xff]
        %v1619 = vld [vmem:[%s7 + $0x48] sm:$0xff]
        %v1620 = vld [vmem:[%s7 + $0x50] sm:$0xff]
        %v1621 = vld [vmem:[%s7 + $0x58] sm:$0xff]
        %v1622 = vld [vmem:[%s7 + $0x60] sm:$0xff]
        %v1623 = vld [vmem:[%s7 + $0x68] sm:$0xff]
        %v1624 = vld [vmem:[%s7 + $0x70] sm:$0xff]
        %v1625 = vld [vmem:[%s7 + $0x78] sm:$0xff]
        %1626 = vmatprep.subr.mxu0 0.0
        %1627 = vmatpush1.msra.mxu0 %v1610
        %1628 = vmatprep.subr.mxu0 0.0
        %1629 = vmatpush1.msra.mxu0 %v1611
        %1630 = vmatprep.subr.mxu0 0.0
        %1631 = vmatpush1.msra.mxu0 %v1612
        %1632 = vmatprep.subr.mxu0 0.0
        %1633 = vmatpush1.msra.mxu0 %v1613
        %1634 = vmatprep.subr.mxu0 0.0
        %1635 = vmatpush1.msra.mxu0 %v1614
        %1636 = vmatprep.subr.mxu0 0.0
        %1637 = vmatpush1.msra.mxu0 %v1615
        %1638 = vmatprep.subr.mxu0 0.0
        %1639 = vmatpush1.msra.mxu0 %v1616
        %1640 = vmatprep.subr.mxu0 0.0
        %1641 = vmatpush1.msra.mxu0 %v1617
        %1642 = vmatprep.subr.mxu0 0.0
        %1643 = vmatpush1.msra.mxu0 %v1618
        %1644 = vmatprep.subr.mxu0 0.0
        %1645 = vmatpush1.msra.mxu0 %v1619
        %1646 = vmatprep.subr.mxu0 0.0
        %1647 = vmatpush1.msra.mxu0 %v1620
        %1648 = vmatprep.subr.mxu0 0.0
        %1649 = vmatpush1.msra.mxu0 %v1621
        %1650 = vmatprep.subr.mxu0 0.0
        %1651 = vmatpush1.msra.mxu0 %v1622
        %1652 = vmatprep.subr.mxu0 0.0
        %1653 = vmatpush1.msra.mxu0 %v1623
        %1654 = vmatprep.subr.mxu0 0.0
        %1655 = vmatpush1.msra.mxu0 %v1624
        %1656 = vmatprep.subr.mxu0 0.0
        %1657 = vmatpush1.msra.mxu0 %v1625
        %1658 = vmatprep.subr.mxu0 0.0
        %1659 = vmatpush1.msra.mxu0 0.0
        %1660 = vmatprep.subr.mxu0 0.0
        %1661 = vmatpush1.msra.mxu0 0.0
        %1662 = vmatprep.subr.mxu0 0.0
        %1663 = vmatpush1.msra.mxu0 0.0
        %1664 = vmatprep.subr.mxu0 0.0
        %1665 = vmatpush1.msra.mxu0 0.0
        %1666 = vmatprep.subr.mxu0 0.0
        %1667 = vmatpush1.msra.mxu0 0.0
        %1668 = vmatprep.subr.mxu0 0.0
        %1669 = vmatpush1.msra.mxu0 0.0
        %1670 = vmatprep.subr.mxu0 0.0
        %1671 = vmatpush1.msra.mxu0 0.0
        %1672 = vmatprep.subr.mxu0 0.0
        %1673 = vmatpush1.msra.mxu0 0.0
        %1674 = vmatprep.subr.mxu0 0.0
        %1675 = vmatpush1.msra.mxu0 0.0
        %1676 = vmatprep.subr.mxu0 0.0
        %1677 = vmatpush1.msra.mxu0 0.0
        %1678 = vmatprep.subr.mxu0 0.0
        %1679 = vmatpush1.msra.mxu0 0.0
        %1680 = vmatprep.subr.mxu0 0.0
        %1681 = vmatpush1.msra.mxu0 0.0
        %1682 = vmatprep.subr.mxu0 0.0
        %1683 = vmatpush1.msra.mxu0 0.0
        %1684 = vmatprep.subr.mxu0 0.0
        %1685 = vmatpush1.msra.mxu0 0.0
        %1686 = vmatprep.subr.mxu0 0.0
        %1687 = vmatpush1.msra.mxu0 0.0
        %1688 = vmatprep.subr.mxu0 0.0
        %1689 = vmatpush1.msra.mxu0 0.0
        %1690 = vmatprep.mubr.f32.mxu0 0.0
        %1691 = vmatmul.mubr.f32.gmra.mrb[0].mxu0 %v1600
        %v1692 = vpop.f32.mrb[0].mxu0
        %v1693 = vadd.f32 0.0, %v1692
        %v1694 = vpop.f32.mrb[0].mxu0
        %1695 = vdwg.mxu0
        %v1696 = vmul.f32 %v1693, 0.00390625
        %1697 = vmatprep.subr.mxu0 0.0
        %1698 = vmatpush1.msra.mxu0 %v1610
        %1699 = vmatprep.subr.mxu0 0.0
        %1700 = vmatpush1.msra.mxu0 %v1611
        %1701 = vmatprep.subr.mxu0 0.0
        %1702 = vmatpush1.msra.mxu0 %v1612
        %1703 = vmatprep.subr.mxu0 0.0
        %1704 = vmatpush1.msra.mxu0 %v1613
        %1705 = vmatprep.subr.mxu0 0.0
        %1706 = vmatpush1.msra.mxu0 %v1614
        %1707 = vmatprep.subr.mxu0 0.0
        %1708 = vmatpush1.msra.mxu0 %v1615
        %1709 = vmatprep.subr.mxu0 0.0
        %1710 = vmatpush1.msra.mxu0 %v1616
        %1711 = vmatprep.subr.mxu0 0.0
        %1712 = vmatpush1.msra.mxu0 %v1617
        %1713 = vmatprep.subr.mxu0 0.0
        %1714 = vmatpush1.msra.mxu0 %v1618
        %1715 = vmatprep.subr.mxu0 0.0
        %1716 = vmatpush1.msra.mxu0 %v1619
        %1717 = vmatprep.subr.mxu0 0.0
        %1718 = vmatpush1.msra.mxu0 %v1620
        %1719 = vmatprep.subr.mxu0 0.0
        %1720 = vmatpush1.msra.mxu0 %v1621
        %1721 = vmatprep.subr.mxu0 0.0
        %1722 = vmatpush1.msra.mxu0 %v1622
        %1723 = vmatprep.subr.mxu0 0.0
        %1724 = vmatpush1.msra.mxu0 %v1623
        %1725 = vmatprep.subr.mxu0 0.0
        %1726 = vmatpush1.msra.mxu0 %v1624
        %1727 = vmatprep.subr.mxu0 0.0
        %1728 = vmatpush1.msra.mxu0 %v1625
        %1729 = vmatprep.subr.mxu0 0.0
        %1730 = vmatpush1.msra.mxu0 0.0
        %1731 = vmatprep.subr.mxu0 0.0
        %1732 = vmatpush1.msra.mxu0 0.0
        %1733 = vmatprep.subr.mxu0 0.0
        %1734 = vmatpush1.msra.mxu0 0.0
        %1735 = vmatprep.subr.mxu0 0.0
        %1736 = vmatpush1.msra.mxu0 0.0
        %1737 = vmatprep.subr.mxu0 0.0
        %1738 = vmatpush1.msra.mxu0 0.0
        %1739 = vmatprep.subr.mxu0 0.0
        %1740 = vmatpush1.msra.mxu0 0.0
        %1741 = vmatprep.subr.mxu0 0.0
        %1742 = vmatpush1.msra.mxu0 0.0
        %1743 = vmatprep.subr.mxu0 0.0
        %1744 = vmatpush1.msra.mxu0 0.0
        %1745 = vmatprep.subr.mxu0 0.0
        %1746 = vmatpush1.msra.mxu0 0.0
        %1747 = vmatprep.subr.mxu0 0.0
        %1748 = vmatpush1.msra.mxu0 0.0
        %1749 = vmatprep.subr.mxu0 0.0
        %1750 = vmatpush1.msra.mxu0 0.0
        %1751 = vmatprep.subr.mxu0 0.0
        %1752 = vmatpush1.msra.mxu0 0.0
        %1753 = vmatprep.subr.mxu0 0.0
        %1754 = vmatpush1.msra.mxu0 0.0
        %1755 = vmatprep.subr.mxu0 0.0
        %1756 = vmatpush1.msra.mxu0 0.0
        %1757 = vmatprep.subr.mxu0 0.0
        %1758 = vmatpush1.msra.mxu0 0.0
        %1759 = vmatprep.subr.mxu0 0.0
        %1760 = vmatpush1.msra.mxu0 0.0
        %1761 = vmatprep.mubr.f32.mxu0 0.0
        %1762 = vmatmul.mubr.f32.gmra.mrb[0].mxu0 %v1609
        %v1763 = vpop.f32.mrb[0].mxu0
        %v1764 = vadd.f32 0.0, %v1763
        %v1765 = vpop.f32.mrb[0].mxu0
        %1766 = vdwg.mxu0
        %v1767 = vmul.f32 %v1764, 0.00390625
        %v1768 = vmul.f32 %v1696, %v1696
        %v1769 = vsub.f32 %v1767, %v1768
        %v1770 = vmax.f32 %v1769, 0.0
        %v1771 = vadd.f32 %v1770, 1e-05
        %v1772 = vrsqrt.pop %v1771
        %v1773 = vld [vmem:[%s8] sm:$0xff]
        %v1775 = vsel %vm1004, %v1772, 0
        %1777 = vmatprep.subr.mxu0 0.0
        %1778 = vmatpush1.msra.mxu0 %v1773
        %1779 = vmatprep.subr.mxu0 0.0
        %1780 = vmatpush1.msra.mxu0 0.0
        %1781 = vmatprep.subr.mxu0 0.0
        %1782 = vmatpush1.msra.mxu0 0.0
        %1783 = vmatprep.subr.mxu0 0.0
        %1784 = vmatpush1.msra.mxu0 0.0
        %1785 = vmatprep.subr.mxu0 0.0
        %1786 = vmatpush1.msra.mxu0 0.0
        %1787 = vmatprep.subr.mxu0 0.0
        %1788 = vmatpush1.msra.mxu0 0.0
        %1789 = vmatprep.subr.mxu0 0.0
        %1790 = vmatpush1.msra.mxu0 0.0
        %1791 = vmatprep.subr.mxu0 0.0
        %1792 = vmatpush1.msra.mxu0 0.0
        %1793 = vmatprep.subr.mxu0 0.0
        %1794 = vmatpush1.msra.mxu0 0.0
        %1795 = vmatprep.subr.mxu0 0.0
        %1796 = vmatpush1.msra.mxu0 0.0
        %1797 = vmatprep.subr.mxu0 0.0
        %1798 = vmatpush1.msra.mxu0 0.0
        %1799 = vmatprep.subr.mxu0 0.0
        %1800 = vmatpush1.msra.mxu0 0.0
        %1801 = vmatprep.subr.mxu0 0.0
        %1802 = vmatpush1.msra.mxu0 0.0
        %1803 = vmatprep.subr.mxu0 0.0
        %1804 = vmatpush1.msra.mxu0 0.0
        %1805 = vmatprep.subr.mxu0 0.0
        %1806 = vmatpush1.msra.mxu0 0.0
        %1807 = vmatprep.subr.mxu0 0.0
        %1808 = vmatpush1.msra.mxu0 0.0
        %1809 = vmatprep.subr.mxu0 0.0
        %1810 = vmatpush1.msra.mxu0 0.0
        %1811 = vmatprep.subr.mxu0 0.0
        %1812 = vmatpush1.msra.mxu0 0.0
        %1813 = vmatprep.subr.mxu0 0.0
        %1814 = vmatpush1.msra.mxu0 0.0
        %1815 = vmatprep.subr.mxu0 0.0
        %1816 = vmatpush1.msra.mxu0 0.0
        %1817 = vmatprep.subr.mxu0 0.0
        %1818 = vmatpush1.msra.mxu0 0.0
        %1819 = vmatprep.subr.mxu0 0.0
        %1820 = vmatpush1.msra.mxu0 0.0
        %1821 = vmatprep.subr.mxu0 0.0
        %1822 = vmatpush1.msra.mxu0 0.0
        %1823 = vmatprep.subr.mxu0 0.0
        %1824 = vmatpush1.msra.mxu0 0.0
        %1825 = vmatprep.subr.mxu0 0.0
        %1826 = vmatpush1.msra.mxu0 0.0
        %1827 = vmatprep.subr.mxu0 0.0
        %1828 = vmatpush1.msra.mxu0 0.0
        %1829 = vmatprep.subr.mxu0 0.0
        %1830 = vmatpush1.msra.mxu0 0.0
        %1831 = vmatprep.subr.mxu0 0.0
        %1832 = vmatpush1.msra.mxu0 0.0
        %1833 = vmatprep.subr.mxu0 0.0
        %1834 = vmatpush1.msra.mxu0 0.0
        %1835 = vmatprep.subr.mxu0 0.0
        %1836 = vmatpush1.msra.mxu0 0.0
        %1837 = vmatprep.subr.mxu0 0.0
        %1838 = vmatpush1.msra.mxu0 0.0
        %1839 = vmatprep.subr.mxu0 0.0
        %1840 = vmatpush1.msra.mxu0 0.0
        %1841 = vmatprep.mubr.f32.mxu0 0.0
        %1842 = vmatmul.mubr.f32.gmra.mrb[0].mxu0 %v1775
        %v1843 = vpop.f32.mrb[0].mxu0
        %v1844 = vadd.f32 0.0, %v1843
        %v1845 = vpop.f32.mrb[0].mxu0
        %1846 = vdwg.mxu0
        %v1847 = vsub.f32 0.0, %v1696
        %v1848 = vmul.f32 %v1847, %v1772
        %v1850 = vsel %vm1004, %v1848, 0
        %1852 = vmatprep.subr.mxu0 0.0
        %1853 = vmatpush1.msra.mxu0 %v1773
        %1854 = vmatprep.subr.mxu0 0.0
        %1855 = vmatpush1.msra.mxu0 0.0
        %1856 = vmatprep.subr.mxu0 0.0
        %1857 = vmatpush1.msra.mxu0 0.0
        %1858 = vmatprep.subr.mxu0 0.0
        %1859 = vmatpush1.msra.mxu0 0.0
        %1860 = vmatprep.subr.mxu0 0.0
        %1861 = vmatpush1.msra.mxu0 0.0
        %1862 = vmatprep.subr.mxu0 0.0
        %1863 = vmatpush1.msra.mxu0 0.0
        %1864 = vmatprep.subr.mxu0 0.0
        %1865 = vmatpush1.msra.mxu0 0.0
        %1866 = vmatprep.subr.mxu0 0.0
        %1867 = vmatpush1.msra.mxu0 0.0
        %1868 = vmatprep.subr.mxu0 0.0
        %1869 = vmatpush1.msra.mxu0 0.0
        %1870 = vmatprep.subr.mxu0 0.0
        %1871 = vmatpush1.msra.mxu0 0.0
        %1872 = vmatprep.subr.mxu0 0.0
        %1873 = vmatpush1.msra.mxu0 0.0
        %1874 = vmatprep.subr.mxu0 0.0
        %1875 = vmatpush1.msra.mxu0 0.0
        %1876 = vmatprep.subr.mxu0 0.0
        %1877 = vmatpush1.msra.mxu0 0.0
        %1878 = vmatprep.subr.mxu0 0.0
        %1879 = vmatpush1.msra.mxu0 0.0
        %1880 = vmatprep.subr.mxu0 0.0
        %1881 = vmatpush1.msra.mxu0 0.0
        %1882 = vmatprep.subr.mxu0 0.0
        %1883 = vmatpush1.msra.mxu0 0.0
        %1884 = vmatprep.subr.mxu0 0.0
        %1885 = vmatpush1.msra.mxu0 0.0
        %1886 = vmatprep.subr.mxu0 0.0
        %1887 = vmatpush1.msra.mxu0 0.0
        %1888 = vmatprep.subr.mxu0 0.0
        %1889 = vmatpush1.msra.mxu0 0.0
        %1890 = vmatprep.subr.mxu0 0.0
        %1891 = vmatpush1.msra.mxu0 0.0
        %1892 = vmatprep.subr.mxu0 0.0
        %1893 = vmatpush1.msra.mxu0 0.0
        %1894 = vmatprep.subr.mxu0 0.0
        %1895 = vmatpush1.msra.mxu0 0.0
        %1896 = vmatprep.subr.mxu0 0.0
        %1897 = vmatpush1.msra.mxu0 0.0
        %1898 = vmatprep.subr.mxu0 0.0
        %1899 = vmatpush1.msra.mxu0 0.0
        %1900 = vmatprep.subr.mxu0 0.0
        %1901 = vmatpush1.msra.mxu0 0.0
        %1902 = vmatprep.subr.mxu0 0.0
        %1903 = vmatpush1.msra.mxu0 0.0
        %1904 = vmatprep.subr.mxu0 0.0
        %1905 = vmatpush1.msra.mxu0 0.0
        %1906 = vmatprep.subr.mxu0 0.0
        %1907 = vmatpush1.msra.mxu0 0.0
        %1908 = vmatprep.subr.mxu0 0.0
        %1909 = vmatpush1.msra.mxu0 0.0
        %1910 = vmatprep.subr.mxu0 0.0
        %1911 = vmatpush1.msra.mxu0 0.0
        %1912 = vmatprep.subr.mxu0 0.0
        %1913 = vmatpush1.msra.mxu0 0.0
        %1914 = vmatprep.subr.mxu0 0.0
        %1915 = vmatpush1.msra.mxu0 0.0
        %1916 = vmatprep.mubr.f32.mxu0 0.0
        %1917 = vmatmul.mubr.f32.gmra.mrb[0].mxu0 %v1850
        %v1918 = vpop.f32.mrb[0].mxu0
        %v1919 = vadd.f32 0.0, %v1918
        %v1920 = vpop.f32.mrb[0].mxu0
        %1921 = vdwg.mxu0
        %v1922 = vlaneseq
        %v1923 = vshrl.u32 %v1922, 7
        %v1924 = vsub.s32 0, %v1923
        %v1925 = vrot.slane %v1844, %v1924
        %v1926 = vmul.f32 %v1592, %v1925
        %v1927 = vmul.f32 %v1593, %v1925
        %v1928 = vlaneseq
        %v1929 = vshrl.u32 %v1928, 7
        %v1930 = vsub.s32 0, %v1929
        %v1931 = vrot.slane %v1919, %v1930
        %v1932 = vadd.f32 %v1926, %v1931
        %v1933 = vadd.f32 %v1927, %v1931
        %v1934 = vld [vmem:[%s3] sm:$0xff]
        %v1935 = vld [vmem:[%s3 + $0x8] sm:$0xff]
        %v1936 = vld [vmem:[%s3 + $0x10] sm:$0xff]
        %v1937 = vld [vmem:[%s3 + $0x18] sm:$0xff]
        %v1938 = vld [vmem:[%s3 + $0x20] sm:$0xff]
        %v1939 = vld [vmem:[%s3 + $0x28] sm:$0xff]
        %v1940 = vld [vmem:[%s3 + $0x30] sm:$0xff]
        %v1941 = vld [vmem:[%s3 + $0x38] sm:$0xff]
        %v1942 = vld [vmem:[%s4] sm:$0x1]
        %v1944 = vlaneseq
        %v1945 = vshrl.u32 %v1944, 7
        %v1946 = vsub.s32 0, %v1945
        %v1947 = vrot.slane %v1942, %v1946
        %1949 = vmatprep.subr.mxu0 0.0
        %1950 = vmatpush1.msra.mxu0 %v1934
        %1951 = vmatprep.subr.mxu0 0.0
        %1952 = vmatpush1.msra.mxu0 %v1935
        %1953 = vmatprep.subr.mxu0 0.0
        %1954 = vmatpush1.msra.mxu0 %v1936
        %1955 = vmatprep.subr.mxu0 0.0
        %1956 = vmatpush1.msra.mxu0 %v1937
        %1957 = vmatprep.subr.mxu0 0.0
        %1958 = vmatpush1.msra.mxu0 %v1938
        %1959 = vmatprep.subr.mxu0 0.0
        %1960 = vmatpush1.msra.mxu0 %v1939
        %1961 = vmatprep.subr.mxu0 0.0
        %1962 = vmatpush1.msra.mxu0 %v1940
        %1963 = vmatprep.subr.mxu0 0.0
        %1964 = vmatpush1.msra.mxu0 %v1941
        %1965 = vmatprep.subr.mxu0 0.0
        %1966 = vmatpush1.msra.mxu0 0.0
        %1967 = vmatprep.subr.mxu0 0.0
        %1968 = vmatpush1.msra.mxu0 0.0
        %1969 = vmatprep.subr.mxu0 0.0
        %1970 = vmatpush1.msra.mxu0 0.0
        %1971 = vmatprep.subr.mxu0 0.0
        %1972 = vmatpush1.msra.mxu0 0.0
        %1973 = vmatprep.subr.mxu0 0.0
        %1974 = vmatpush1.msra.mxu0 0.0
        %1975 = vmatprep.subr.mxu0 0.0
        %1976 = vmatpush1.msra.mxu0 0.0
        %1977 = vmatprep.subr.mxu0 0.0
        %1978 = vmatpush1.msra.mxu0 0.0
        %1979 = vmatprep.subr.mxu0 0.0
        %1980 = vmatpush1.msra.mxu0 0.0
        %1981 = vmatprep.subr.mxu0 0.0
        %1982 = vmatpush1.msra.mxu0 0.0
        %1983 = vmatprep.subr.mxu0 0.0
        %1984 = vmatpush1.msra.mxu0 0.0
        %1985 = vmatprep.subr.mxu0 0.0
        %1986 = vmatpush1.msra.mxu0 0.0
        %1987 = vmatprep.subr.mxu0 0.0
        %1988 = vmatpush1.msra.mxu0 0.0
        %1989 = vmatprep.subr.mxu0 0.0
        %1990 = vmatpush1.msra.mxu0 0.0
        %1991 = vmatprep.subr.mxu0 0.0
        %1992 = vmatpush1.msra.mxu0 0.0
        %1993 = vmatprep.subr.mxu0 0.0
        %1994 = vmatpush1.msra.mxu0 0.0
        %1995 = vmatprep.subr.mxu0 0.0
        %1996 = vmatpush1.msra.mxu0 0.0
        %1997 = vmatprep.subr.mxu0 0.0
        %1998 = vmatpush1.msra.mxu0 0.0
        %1999 = vmatprep.subr.mxu0 0.0
        %2000 = vmatpush1.msra.mxu0 0.0
        %2001 = vmatprep.subr.mxu0 0.0
        %2002 = vmatpush1.msra.mxu0 0.0
        %2003 = vmatprep.subr.mxu0 0.0
        %2004 = vmatpush1.msra.mxu0 0.0
        %2005 = vmatprep.subr.mxu0 0.0
        %2006 = vmatpush1.msra.mxu0 0.0
        %2007 = vmatprep.subr.mxu0 0.0
        %2008 = vmatpush1.msra.mxu0 0.0
        %2009 = vmatprep.subr.mxu0 0.0
        %2010 = vmatpush1.msra.mxu0 0.0
        %2011 = vmatprep.subr.mxu0 0.0
        %2012 = vmatpush1.msra.mxu0 0.0
        %2013 = vmatprep.mubr.f32.mxu0 0.0
        %2014 = vmatmul.mubr.f32.gmra.mrb[0].mxu0 %v571
        %v2015 = vpop.f32.mrb[0].mxu0
        %v2016 = vadd.f32 %v1947, %v2015
        %v2017 = vpop.f32.mrb[0].mxu0
        %2018 = vmatprep.mubr.f32.mxu0 0.0
        %2019 = vmatmul.mubr.f32.gmra.mrb[0].mxu0 %v574
        %v2020 = vpop.f32.mrb[0].mxu0
        %v2021 = vadd.f32 %v1947, %v2020
        %v2022 = vpop.f32.mrb[0].mxu0
        %2023 = vdwg.mxu0
        %v2024 = vadd.f32 %v1932, %v2016
        %v2025 = vadd.f32 %v1933, %v2021
        %v2026 = vmax.f32 %v2024, 0.0
        %v2027 = vmax.f32 %v2025, 0.0
        %2028 = vst [vmem:[%s365] sm:$0xff] %v2026
        %2029 = vst [vmem:[%s365 + $0x8] sm:$0xff] %v2027
        %s2030 = sand.u32 %s229, 1
        %s2031 = scalar_lea.sflag [#allocation4], %s2030
        %s2032 = sand.u32 %s229, 1
        %s2033 = smul.addr %s2032, 16
        %s2034 = scalar_lea.vmem [#allocation7], %s2033
        // Predicated region
        $region65: #{tpu_custom_call.1} parent=55 // pred_check
          %p2035 = pneg %p239
        $region66: #{tpu_custom_call.1} parent=55 // pred_check_branch
          %2037 = sbr.rel (%p2035) target = $region68
        $region67: #{tpu_custom_call.1} parent=55 // pred_region
          %s2039 = ssub.s32 256, 256
          %2040 = vsyncadd %s2031, %s2039
          %s2041 = smul.addr %s27, 2
          %s2042 = smul.addr %s2041, 128
          %s2043 = scalar_lea.hbm %s9, %s2042
          %s2044 = sshll.u32 %s2034, 4
          %s2045 = int_to_ptr.vmem [resolvable:$true] %s2044
          %2050 = dma.vmem_to_hbm [thread:$0]  %s2045, 256, %s2043, %s2031, 128, 128, 8
        $region68: #{tpu_custom_call.1} parent=55 // pred_fallthru
          _
      $region56: #{tpu_custom_call.1} parent=5 // pred_fallthru
        _
      %p2051 = scmp.le.s32.totalorder 2, %s22
      // Predicated region
      $region69: #{tpu_custom_call.1} parent=5 // pred_check
        %p2052 = pneg %p2051
      $region70: #{tpu_custom_call.1} parent=5 // pred_check_branch
        %2054 = sbr.rel (%p2052) target = $region72
      $region71: #{tpu_custom_call.1} parent=5 // pred_region
        %s2055 = ssub.s32 %s22, 2
        // Predicated region
        $region73: #{tpu_custom_call.1} parent=71 // pred_check
          %p2056 = pneg %p245
        $region74: #{tpu_custom_call.1} parent=71 // pred_check_branch
          %2058 = sbr.rel (%p2056) target = $region76
        $region75: #{tpu_custom_call.1} parent=71 // pred_region
          %s2059 = sand.u32 %s230, 1
          %s2060 = scalar_lea.sflag [#allocation4], %s2059
          %s2061 = sand.u32 %s230, 1
          %s2062 = smul.addr %s2061, 16
          %s2063 = scalar_lea.vmem [#allocation7], %s2062
          %2064 = dma.done %s2060, 256
        $region76: #{tpu_custom_call.1} parent=71 // pred_fallthru
          _
      $region72: #{tpu_custom_call.1} parent=5 // pred_fallthru
        _
    $region6: #{tpu_custom_call.1} parent=1 // loop_footer
      %s26 = sadd.s32 1, %s22
    $region7: #{tpu_custom_call.1} parent=1 // loop_footer_branch
      %21 = sbr.rel target = $region3
    $region8: #{tpu_custom_call.1} parent=1 // loop_exit
      _
    %2065 = vsyncpa [#allocation3], 1
    %s2066 = scalar_lea.sflag [#allocation3], 1
    %2067 = vsyncpa %s2066, 1
    %2068 = vsyncpa [#allocation6], 1
    %2069 = vsyncpa [#allocation4], 1
    %s2070 = scalar_lea.sflag [#allocation4], 1
    %2071 = vsyncpa %s2070, 1

</llo_original>
